<compile_context>
chip_gen: v7x
topology: tpu7x:2x2x1
jax: 0.10.0
libtpu: 0.0.40
codegen_flags: <defaults>
</compile_context>

<pallas_src>
import functools

import jax
import jax.numpy as jnp
from jax import lax
from jax.experimental import pallas as pl
from jax.experimental.pallas import tpu as pltpu

CONST = 10000.0
BN_EPS = 1e-5
NEG_INF = -1e30


def _round_up(v, m):
    return (v + m - 1) // m * m


# ----------------------------- kernel helpers ------------------------------ #
def _silu(z):
    # sigmoid = recip(1 + exp(-z)): exp and approximate reciprocal both run on
    # the EUP slot, keeping the VALU free.
    return z * pl.reciprocal(1.0 + jnp.exp(-z), approx=True)


def _softplus(z):
    return jnp.maximum(z, 0.0) + jnp.log(1.0 + jnp.exp(-jnp.abs(z)))


def _contract0(a, b):
    # (C, M) x (C, N) -> (M, N): transposed-LHS contraction (MXU-native).
    return lax.dot_general(a, b, dimension_numbers=(((0,), (0,)), ((), ())),
                           preferred_element_type=jnp.float32)


# --------------------------------- kernel ---------------------------------- #
def nowcast_kernel(x_cm_ref, wslab_ref, fslab_ref, out_ref, *,
                   D, P, tb, C1, K, H1, H2, out_lanes, woff, foff):
    f32, bf16 = jnp.float32, jnp.bfloat16
    gp = tb * P
    half = K // 2

    def wsl(key, rows, cols):          # static slice into the bf16 weight slab
        o = woff[key]
        return wslab_ref[o:o + rows, :cols]

    def fsl(key, rows, cols):          # static slice into the f32 bias/mask slab
        o = foff[key]
        return fslab_ref[o:o + rows, :cols]

    x_cm = x_cm_ref[...]                                    # (D, gp) f32 channel-major
    x_bf = x_cm.astype(bf16)

    # ---- attention: fused QKV projection (1/sqrt(D) already folded into w_q) ----
    qkv = jnp.dot(wsl("wqkv", 3 * D, D), x_bf,
                  preferred_element_type=f32) + fsl("bqkv", 3 * D, gp)   # (3D, gp)
    q = qkv[0:D, :]
    k = qkv[D:2 * D, :]
    v = qkv[2 * D:3 * D, :]

    # scores^T[key, query]; additive block-diagonal mask keeps samples independent.
    s_t = _contract0(k.astype(bf16), q.astype(bf16)) + fsl("mask", gp, gp)
    s_t = s_t - jnp.max(s_t, axis=0, keepdims=True)         # stable softmax over keys
    e = jnp.exp(s_t)
    inv = 1.0 / jnp.sum(e, axis=0, keepdims=True)           # exact (1, gp) reciprocal

    o_cm = jnp.dot(v.astype(bf16), e.astype(bf16),
                   preferred_element_type=f32) * inv        # normalize after the matmul
    ao = jnp.dot(wsl("wo", D, D), o_cm.astype(bf16),
                 preferred_element_type=f32) + fsl("bo", D, gp)          # (D, gp)

    # ---- fc1 over past_units (block-diagonal weight) + SiLU + residual ----
    y = _silu(jnp.dot(ao.astype(bf16), wsl("w1", gp, gp),
                      preferred_element_type=f32) + fsl("b1", 1, gp))
    xc = y + x_cm                                            # (D, gp) f32

    # ---- fused conv1d ('same'): roll taps (XLU), mask sample edges, one matmul ----
    tapmask = fsl("tap", K, gp)                              # (K, gp) 0/1 f32

    def conv_same(xin, w_key, kcin, cout, b_key):
        taps = []
        for t in range(K):
            s = t - half
            if s == 0:
                taps.append(xin.astype(bf16))
            else:
                rolled = pltpu.roll(xin, shift=(-s) % gp, axis=1)
                taps.append((rolled * tapmask[t:t + 1, :]).astype(bf16))
        stack = jnp.concatenate(taps, axis=0)                # (K*Cin, gp) bf16
        return _contract0(wsl(w_key, kcin, cout), stack) + fsl(b_key, cout, gp)

    h1 = _silu(conv_same(xc, "wc1", K * D, C1, "bias1"))     # (C1, gp)
    h2 = _silu(conv_same(h1, "wc2", K * C1, 1, "bias2"))     # (1,  gp)

    # ---- head: BN folded into weights, block-diagonal across the group ----
    z = _silu(jnp.dot(h2.astype(bf16), wsl("w3", gp, tb * H1),
                      preferred_element_type=f32) + fsl("b3", 1, tb * H1))
    z = _silu(jnp.dot(z.astype(bf16), wsl("w4", tb * H1, tb * H2),
                      preferred_element_type=f32) + fsl("b4", 1, tb * H2))
    z = jnp.dot(z.astype(bf16), wsl("wnb", tb * H2, out_lanes),
                preferred_element_type=f32) + fsl("bnb", 1, out_lanes)   # (1, out_lanes)

    # ---- NB params: lane 2i -> lbda_i, lane 2i+1 -> phi_i (scale/shift rows) ----
    row = _softplus(z) * fsl("nbs", 1, out_lanes) + fsl("nbt", 1, out_lanes)
    out_ref[...] = jnp.broadcast_to(row, (8, out_lanes))     # lane-dense, aligned store


# -------------------------------- wrapper ----------------------------------- #
def _pack_slab(entries, lanes, dtype, row_align):
    """Row-pack 2-D arrays into one (rows, lanes) slab; returns (slab, offsets)."""
    offs, r = {}, 0
    for name, a in entries:
        assert a.ndim == 2 and a.shape[1] <= lanes
        r = _round_up(r, row_align)
        offs[name] = r
        r += a.shape[0]
    slab = jnp.zeros((_round_up(r, row_align), lanes), dtype)
    for name, a in entries:
        o = offs[name]
        slab = slab.at[o:o + a.shape[0], :a.shape[1]].set(a.astype(dtype))
    return slab, offs


def nowcast_pnn_forward(x, params, *, weight_dtype=jnp.bfloat16):
    f32 = jnp.float32
    B, P, D = x.shape
    C1, _, K = params["w_c1"].shape
    H1 = params["w_fc3"].shape[0]
    H2 = params["w_fc4"].shape[0]

    # ---- group-size heuristic: gp <= 128 (MXU-native lanes, minimal masked
    # waste); B*P >= 256 then yields ng >= 2 groups for the v7x 2-TC split.
    tb = 1 if P >= 128 else max(1, min(B, 128 // P))
    b_pad = _round_up(B, tb)
    if (tb * P) % 128 != 0 and b_pad // tb > 1:
        tb = b_pad = B                      # fallback: single group -> full-array blocks
    ng = b_pad // tb
    gp = tb * P
    out_lanes = max(128, _round_up(2 * tb, 128))
    lanes = _round_up(max(gp, out_lanes), 128)

    def bn_fold(bn):
        gamma, beta, rm, rv = bn
        s = gamma / jnp.sqrt(rv + BN_EPS)
        return s, beta - rm * s

    s1, t1 = bn_fold(params["bn1"])
    s2, t2 = bn_fold(params["bn2"])
    s5, t5 = bn_fold(params["bn5"])
    s6, t6 = bn_fold(params["bn6"])
    sf, tf = bn_fold(params["bnf"])

    x = x.astype(f32)
    if b_pad != B:
        x = jnp.concatenate([x, jnp.zeros((b_pad - B, P, D), f32)], axis=0)
    x_cm = jnp.transpose(x, (2, 0, 1)).reshape(D, b_pad * P)     # (D, B_pad*P)

    # attention projections: fuse QKV, fold 1/sqrt(D) into w_q / b_q.
    w_in, b_in = params["w_in"], params["b_in"]
    scale = 1.0 / (D ** 0.5)
    wqkv = jnp.concatenate([w_in[:D] * scale, w_in[D:2 * D], w_in[2 * D:]], axis=0)
    bqkv = jnp.concatenate([b_in[:D] * scale, b_in[D:2 * D], b_in[2 * D:]], axis=0)
    bqkv = jnp.broadcast_to(bqkv[:, None], (3 * D, gp))
    bo = jnp.broadcast_to(params["b_out"][:, None], (D, gp))

    # additive block-diagonal attention mask (0 on own sample, -1e30 elsewhere).
    sid = jnp.arange(gp) // P
    mask = jnp.where(sid[:, None] == sid[None, :], 0.0, NEG_INF).astype(f32)

    eye_g = jnp.eye(tb, dtype=f32)
    w1bdT = jnp.kron(eye_g, params["w_fc1"].T)                   # (gp, gp)
    b1_row = jnp.tile(params["b_fc1"], tb)[None, :]              # (1, gp)

    # conv layers: BN scale folded into weights (stored transposed (K*Cin, Cout)),
    # BN shift folded into a position-dependent bias (exact under 'same' zero pad).
    pos = jnp.arange(P)
    taps = jnp.arange(K) - K // 2
    src = pos[None, :] + taps[:, None]
    valid = ((src >= 0) & (src < P)).astype(f32)                 # (K, P)
    tapmask = jnp.tile(valid, (1, tb))                           # (K, gp)

    w_c1 = params["w_c1"]                                        # (C1, D, K)
    wc1_km = (jnp.transpose(w_c1, (0, 2, 1)) * s1[None, None, :]).reshape(C1, K * D).T
    bias1 = jnp.tile(params["b_c1"][:, None]
                     + jnp.einsum("cdk,d->ck", w_c1, t1) @ valid, (1, tb))   # (C1, gp)

    w_c2 = params["w_c2"]                                        # (1, C1, K)
    wc2_km = (jnp.transpose(w_c2, (0, 2, 1)) * s2[None, None, :]).reshape(1, K * C1).T
    bias2 = jnp.tile(params["b_c2"][:, None]
                     + jnp.einsum("cdk,d->ck", w_c2, t2) @ valid, (1, tb))   # (1, gp)

    # head: fold BN into fc weights, then block-diagonal over the group.
    w3_eff = params["w_fc3"] * s5[None, :]
    b3_eff = params["b_fc3"] + params["w_fc3"] @ t5
    w3_big = jnp.kron(eye_g, w3_eff.T)                           # (gp, tb*H1)
    b3_row = jnp.tile(b3_eff, tb)[None, :]

    w4_eff = params["w_fc4"] * s6[None, :]
    b4_eff = params["b_fc4"] + params["w_fc4"] @ t6
    w4_big = jnp.kron(eye_g, w4_eff.T)                           # (tb*H1, tb*H2)
    b4_row = jnp.tile(b4_eff, tb)[None, :]

    wnb_eff = params["w_nb"] * sf[None, :]
    bnb_eff = params["b_nb"] + params["w_nb"] @ tf
    wnb_big = jnp.kron(eye_g, wnb_eff.T)                         # (tb*H2, 2*tb)
    bnb_row = jnp.tile(bnb_eff, tb)[None, :]                     # (1, 2*tb)

    lane = jnp.arange(out_lanes)
    nb_scale = jnp.where(lane % 2 == 0, CONST, CONST * CONST).astype(f32)[None, :]
    nb_shift = jnp.where(lane % 2 == 0, 0.0, 1e-5).astype(f32)[None, :]

    # ---- pack everything: one bf16 weight slab + one f32 bias/mask slab ----
    wslab, woff = _pack_slab(
        [("wqkv", wqkv), ("wo", params["w_out"]), ("w1", w1bdT),
         ("wc1", wc1_km), ("wc2", wc2_km),
         ("w3", w3_big), ("w4", w4_big), ("wnb", wnb_big)],
        lanes, weight_dtype, row_align=16)
    fslab, foff = _pack_slab(
        [("mask", mask), ("bqkv", bqkv), ("bo", bo), ("b1", b1_row),
         ("tap", tapmask), ("bias1", bias1), ("bias2", bias2),
         ("b3", b3_row), ("b4", b4_row), ("bnb", bnb_row),
         ("nbs", nb_scale), ("nbt", nb_shift)],
        lanes, f32, row_align=8)

    kernel = functools.partial(
        nowcast_kernel, D=D, P=P, tb=tb, C1=C1, K=K, H1=H1, H2=H2,
        out_lanes=out_lanes, woff=woff, foff=foff)

    flops = 2 * ng * (3 * D * D * gp + 2 * D * gp * gp + D * D * gp + D * gp * gp
                      + C1 * K * D * gp + K * C1 * gp
                      + gp * tb * H1 + tb * H1 * tb * H2 + tb * H2 * out_lanes)
    transc = ng * (gp * gp + 4 * D * gp + 2 * C1 * gp + 2 * gp
                   + 2 * tb * (H1 + H2) + 2 * out_lanes)
    bytes_acc = int(x_cm.size * 4 + wslab.size * wslab.dtype.itemsize
                    + fslab.size * 4 + ng * 8 * out_lanes * 4)

    out = pl.pallas_call(
        kernel,
        out_shape=jax.ShapeDtypeStruct((ng * 8, out_lanes), f32),
        grid_spec=pltpu.PrefetchScalarGridSpec(
            num_scalar_prefetch=0,
            grid=(ng,),
            in_specs=[
                pl.BlockSpec((D, gp), lambda g: (0, g)),
                pl.BlockSpec(wslab.shape, lambda g: (0, 0)),
                pl.BlockSpec(fslab.shape, lambda g: (0, 0)),
            ],
            out_specs=pl.BlockSpec((8, out_lanes), lambda g: (g, 0)),
        ),
        compiler_params=pltpu.CompilerParams(dimension_semantics=("parallel",)),
        cost_estimate=pl.CostEstimate(flops=int(flops), transcendentals=int(transc),
                                      bytes_accessed=bytes_acc),
    )(x_cm, wslab, fslab)

    rows = out.reshape(ng, 8, out_lanes)[:, 0, :]                # (ng, out_lanes)
    vals = rows[:, :2 * tb].reshape(b_pad, 2)[:B]
    return vals[:, 0], vals[:, 1]                                # lbda, phi


# --------------------------- pure-JAX reference ----------------------------- #
def reference_forward(x, params):
    B, P, D = x.shape
    hp = lax.Precision.HIGHEST
    silu = lambda z: z * jax.nn.sigmoid(z)

    w_in, b_in = params["w_in"], params["b_in"]
    wq, wk, wv = w_in[:D], w_in[D:2 * D], w_in[2 * D:]
    bq, bk, bv = b_in[:D], b_in[D:2 * D], b_in[2 * D:]
    q = jnp.einsum("bpd,ed->bpe", x, wq, precision=hp) + bq
    k = jnp.einsum("bpd,ed->bpe", x, wk, precision=hp) + bk
    v = jnp.einsum("bpd,ed->bpe", x, wv, precision=hp) + bv
    scores = jnp.einsum("bpe,bqe->bpq", q, k, precision=hp) / jnp.sqrt(jnp.float32(D))
    attn = jax.nn.softmax(scores, axis=-1)
    ao = jnp.einsum("bpq,bqe->bpe", attn, v, precision=hp)
    ao = jnp.einsum("bpe,fe->bpf", ao, params["w_out"], precision=hp) + params["b_out"]

    y = silu(jnp.einsum("bdp,qp->bdq", jnp.swapaxes(ao, 1, 2), params["w_fc1"],
                        precision=hp) + params["b_fc1"])
    x2 = jnp.swapaxes(y, 1, 2) + x
    xc = jnp.swapaxes(x2, 1, 2)                     # (B, D, P)

    def bn(z, bnp, axis):
        gamma, beta, rm, rv = bnp
        shp = [1] * z.ndim
        shp[axis] = -1
        return ((z - rm.reshape(shp)) / jnp.sqrt(rv.reshape(shp) + BN_EPS)
                * gamma.reshape(shp) + beta.reshape(shp))

    xb = bn(xc, params["bn1"], 1)
    h1 = lax.conv_general_dilated(xb, params["w_c1"], (1,), "SAME",
                                  dimension_numbers=("NCH", "OIH", "NCH"),
                                  precision=hp) + params["b_c1"][None, :, None]
    h1 = silu(h1)
    h1b = bn(h1, params["bn2"], 1)
    h2 = lax.conv_general_dilated(h1b, params["w_c2"], (1,), "SAME",
                                  dimension_numbers=("NCH", "OIH", "NCH"),
                                  precision=hp) + params["b_c2"][None, :, None]
    h2 = silu(h2)
    z = h2[:, 0, :]                                 # (B, P)
    z = bn(z, params["bn5"], 1)
    z = silu(jnp.einsum("bp,hp->bh", z, params["w_fc3"], precision=hp) + params["b_fc3"])
    z = bn(z, params["bn6"], 1)
    z = silu(jnp.einsum("bh,gh->bg", z, params["w_fc4"], precision=hp) + params["b_fc4"])
    z = bn(z, params["bnf"], 1)
    z = jnp.einsum("bg,og->bo", z, params["w_nb"], precision=hp) + params["b_nb"]
    sp = jax.nn.softplus(z)
    return CONST * sp[:, 0], CONST * CONST * sp[:, 1] + 1e-5


# ------------------------------- param init --------------------------------- #
def init_params(key, P, D, C1, H1, H2):
    ks = iter(jax.random.split(key, 64))

    def rnd(shape, fan_in):
        return (jax.random.normal(next(ks), shape)
                / jnp.sqrt(jnp.float32(fan_in))).astype(jnp.float32)

    def vec(n, scale=0.05):
        return (scale * jax.random.normal(next(ks), (n,))).astype(jnp.float32)

    def bn(n):
        gamma = (1.0 + 0.1 * jax.random.normal(next(ks), (n,))).astype(jnp.float32)
        beta = vec(n, 0.1)
        rm = vec(n, 0.1)
        rv = (1.0 + 0.2 * jax.random.uniform(next(ks), (n,))).astype(jnp.float32)
        return (gamma, beta, rm, rv)

    params = dict(
        w_in=rnd((3 * D, D), D), b_in=vec(3 * D),
        w_out=rnd((D, D), D), b_out=vec(D),
        w_fc1=rnd((P, P), P), b_fc1=vec(P),
        w_c1=rnd((C1, D, 7), 7 * D), b_c1=vec(C1),
        w_c2=rnd((1, C1, 7), 7 * C1), b_c2=vec(1),
        w_fc3=rnd((H1, P), P), b_fc3=vec(H1),
        w_fc4=rnd((H2, H1), H1), b_fc4=vec(H2),
        w_nb=rnd((2, H2), H2), b_nb=vec(2),
    )
    params["bn1"] = bn(D)
    params["bn2"] = bn(C1)
    params["bn5"] = bn(P)
    params["bn6"] = bn(H1)
    params["bnf"] = bn(H2)
    return params


# ---------------------------------- main ------------------------------------ #
if __name__ == "__main__":
    # Small shapes consistent with the module: (B, past_units, max_delay)
    B, P, D = 4, 32, 32
    C1, H1, H2 = 16, 16, 8          # conv_channels=[16, 1], hidden_units=[16, 8]

    key = jax.random.PRNGKey(0)
    kx, kp = jax.random.split(key)
    x = jax.random.normal(kx, (B, P, D), dtype=jnp.float32)
    params = init_params(kp, P, D, C1, H1, H2)

    fwd = jax.jit(functools.partial(nowcast_pnn_forward, params=params))
    lbda, phi = fwd(x)
    jax.block_until_ready((lbda, phi))

    lbda_ref, phi_ref = reference_forward(x, params)
    assert lbda.shape == (B,) and phi.shape == (B,)
    # Kernel uses bf16 MXU operands (f32 accumulation) and an approximate EUP
    # reciprocal inside SiLU vs. the f32 "highest" reference, so allow slack.
    assert jnp.allclose(lbda, lbda_ref, rtol=1e-1, atol=1e-2), (lbda, lbda_ref)
    assert jnp.allclose(phi, phi_ref, rtol=1e-1, atol=1e-2), (phi, phi_ref)

    print("KERNEL_OK")
</pallas_src>

<mosaic_0001>
module attributes {stable_mosaic.version = 11 : i64} {
  func.func @nowcast_kernel(%arg0: i32, %arg1: memref<32x128xf32, #tpu.memory_space<vmem>>, %arg2: memref<816x128xbf16, #tpu.memory_space<vmem>>, %arg3: memref<336x128xf32, #tpu.memory_space<vmem>>, %arg4: memref<8x128xf32, #tpu.memory_space<vmem>>) attributes {dimension_semantics = [#tpu.dimension_semantics<parallel>], iteration_bounds = array<i64: 1>, scalar_prefetch = 0 : i64, scratch_operands = 0 : i64, tpu.core_type = #tpu.core_type<tc>, window_params = [{transform_indices = @transform_0, window_bounds = array<i64: 32, 128>}, {pipeline_mode = #tpu.pipeline_mode<synchronous>, transform_indices = @transform_1, window_bounds = array<i64: 816, 128>}, {pipeline_mode = #tpu.pipeline_mode<synchronous>, transform_indices = @transform_2, window_bounds = array<i64: 336, 128>}, {transform_indices = @transform_3, window_bounds = array<i64: 8, 128>}]} {
    %c0 = arith.constant 0 : index
    %c0_0 = arith.constant 0 : index
    %0 = vector.load %arg1[%c0, %c0_0] : memref<32x128xf32, #tpu.memory_space<vmem>>, vector<32x128xf32>
    %1 = arith.truncf %0 : vector<32x128xf32> to vector<32x128xbf16>
    %c0_1 = arith.constant 0 : index
    %c0_2 = arith.constant 0 : index
    %2 = vector.load %arg2[%c0_1, %c0_2] : memref<816x128xbf16, #tpu.memory_space<vmem>>, vector<96x32xbf16>
    %cst = arith.constant dense<0.000000e+00> : vector<96x128xf32>
    %3 = tpu.matmul %2, %1, %cst {dimension_numbers = #tpu.dot_dimension_numbers<[1], [0], [0], [1], [0, 0, 1, 1], [], []>} : vector<96x32xbf16>, vector<32x128xbf16>, vector<96x128xf32> -> vector<96x128xf32>
    %c128 = arith.constant 128 : index
    %c0_3 = arith.constant 0 : index
    %4 = vector.load %arg3[%c128, %c0_3] : memref<336x128xf32, #tpu.memory_space<vmem>>, vector<96x128xf32>
    %5 = arith.addf %3, %4 : vector<96x128xf32>
    %6 = vector.extract_strided_slice %5 {offsets = [0, 0], sizes = [32, 128], strides = [1, 1]} : vector<96x128xf32> to vector<32x128xf32>
    %7 = vector.extract_strided_slice %5 {offsets = [32, 0], sizes = [32, 128], strides = [1, 1]} : vector<96x128xf32> to vector<32x128xf32>
    %8 = vector.extract_strided_slice %5 {offsets = [64, 0], sizes = [32, 128], strides = [1, 1]} : vector<96x128xf32> to vector<32x128xf32>
    %9 = arith.truncf %7 : vector<32x128xf32> to vector<32x128xbf16>
    %10 = arith.truncf %6 : vector<32x128xf32> to vector<32x128xbf16>
    %cst_4 = arith.constant dense<0.000000e+00> : vector<128x128xf32>
    %11 = tpu.matmul %9, %10, %cst_4 {dimension_numbers = #tpu.dot_dimension_numbers<[0], [0], [1], [1], [0, 1, 1, 1], [], []>} : vector<32x128xbf16>, vector<32x128xbf16>, vector<128x128xf32> -> vector<128x128xf32>
    %c0_5 = arith.constant 0 : index
    %c0_6 = arith.constant 0 : index
    %12 = vector.load %arg3[%c0_5, %c0_6] : memref<336x128xf32, #tpu.memory_space<vmem>>, vector<128x128xf32>
    %13 = arith.addf %11, %12 : vector<128x128xf32>
    %cst_7 = arith.constant dense<0xFF800000> : vector<128xf32>
    %14 = vector.multi_reduction <maximumf>, %13, %cst_7 [0] : vector<128x128xf32> to vector<128xf32>
    %15 = vector.shape_cast %14 : vector<128xf32> to vector<1x128xf32>
    %16 = vector.broadcast %15 : vector<1x128xf32> to vector<128x128xf32>
    %17 = arith.subf %13, %16 : vector<128x128xf32>
    %18 = math.exp %17 : vector<128x128xf32>
    %cst_8 = arith.constant dense<0.000000e+00> : vector<128xf32>
    %19 = vector.multi_reduction <add>, %18, %cst_8 [0] : vector<128x128xf32> to vector<128xf32>
    %20 = vector.shape_cast %19 : vector<128xf32> to vector<1x128xf32>
    %cst_9 = arith.constant 1.000000e+00 : f32
    %21 = vector.broadcast %cst_9 : f32 to vector<1x128xf32>
    %22 = arith.divf %21, %20 : vector<1x128xf32>
    %23 = arith.truncf %8 : vector<32x128xf32> to vector<32x128xbf16>
    %24 = arith.truncf %18 : vector<128x128xf32> to vector<128x128xbf16>
    %cst_10 = arith.constant dense<0.000000e+00> : vector<32x128xf32>
    %25 = tpu.matmul %23, %24, %cst_10 {dimension_numbers = #tpu.dot_dimension_numbers<[1], [0], [0], [1], [0, 0, 1, 1], [], []>} : vector<32x128xbf16>, vector<128x128xbf16>, vector<32x128xf32> -> vector<32x128xf32>
    %26 = vector.broadcast %22 : vector<1x128xf32> to vector<32x128xf32>
    %27 = arith.mulf %25, %26 : vector<32x128xf32>
    %c96 = arith.constant 96 : index
    %c0_11 = arith.constant 0 : index
    %28 = vector.load %arg2[%c96, %c0_11] : memref<816x128xbf16, #tpu.memory_space<vmem>>, vector<32x32xbf16>
    %29 = arith.truncf %27 : vector<32x128xf32> to vector<32x128xbf16>
    %cst_12 = arith.constant dense<0.000000e+00> : vector<32x128xf32>
    %30 = tpu.matmul %28, %29, %cst_12 {dimension_numbers = #tpu.dot_dimension_numbers<[1], [0], [0], [1], [0, 0, 1, 1], [], []>} : vector<32x32xbf16>, vector<32x128xbf16>, vector<32x128xf32> -> vector<32x128xf32>
    %c224 = arith.constant 224 : index
    %c0_13 = arith.constant 0 : index
    %31 = vector.load %arg3[%c224, %c0_13] : memref<336x128xf32, #tpu.memory_space<vmem>>, vector<32x128xf32>
    %32 = arith.addf %30, %31 : vector<32x128xf32>
    %33 = arith.truncf %32 : vector<32x128xf32> to vector<32x128xbf16>
    %c128_14 = arith.constant 128 : index
    %c0_15 = arith.constant 0 : index
    %34 = vector.load %arg2[%c128_14, %c0_15] : memref<816x128xbf16, #tpu.memory_space<vmem>>, vector<128x128xbf16>
    %cst_16 = arith.constant dense<0.000000e+00> : vector<32x128xf32>
    %35 = tpu.matmul %33, %34, %cst_16 {dimension_numbers = #tpu.dot_dimension_numbers<[1], [0], [0], [1], [0, 0, 1, 1], [], []>} : vector<32x128xbf16>, vector<128x128xbf16>, vector<32x128xf32> -> vector<32x128xf32>
    %c256 = arith.constant 256 : index
    %c0_17 = arith.constant 0 : index
    %36 = vector.load %arg3[%c256, %c0_17] : memref<336x128xf32, #tpu.memory_space<vmem>>, vector<1x128xf32>
    %37 = vector.broadcast %36 : vector<1x128xf32> to vector<32x128xf32>
    %38 = arith.addf %35, %37 : vector<32x128xf32>
    %cst_18 = arith.constant 0.000000e+00 : f32
    %39 = vector.broadcast %cst_18 : f32 to vector<32x128xf32>
    %40 = arith.subf %39, %38 : vector<32x128xf32>
    %41 = math.exp %40 : vector<32x128xf32>
    %cst_19 = arith.constant 1.000000e+00 : f32
    %42 = vector.broadcast %cst_19 : f32 to vector<32x128xf32>
    %43 = arith.addf %42, %41 : vector<32x128xf32>
    %44 = tpu.reciprocal %43 {approx = true} : vector<32x128xf32> -> vector<32x128xf32>
    %45 = arith.mulf %38, %44 : vector<32x128xf32>
    %46 = arith.addf %45, %0 : vector<32x128xf32>
    %c264 = arith.constant 264 : index
    %c0_20 = arith.constant 0 : index
    %47 = vector.load %arg3[%c264, %c0_20] : memref<336x128xf32, #tpu.memory_space<vmem>>, vector<7x128xf32>
    %c3_i32 = arith.constant 3 : i32
    %48 = tpu.dynamic_rotate %46 by %c3_i32 dim 1 : vector<32x128xf32>, i32 -> vector<32x128xf32>
    %49 = vector.extract_strided_slice %47 {offsets = [0, 0], sizes = [1, 128], strides = [1, 1]} : vector<7x128xf32> to vector<1x128xf32>
    %50 = vector.broadcast %49 : vector<1x128xf32> to vector<32x128xf32>
    %51 = arith.mulf %48, %50 : vector<32x128xf32>
    %52 = arith.truncf %51 : vector<32x128xf32> to vector<32x128xbf16>
    %c2_i32 = arith.constant 2 : i32
    %53 = tpu.dynamic_rotate %46 by %c2_i32 dim 1 : vector<32x128xf32>, i32 -> vector<32x128xf32>
    %54 = vector.extract_strided_slice %47 {offsets = [1, 0], sizes = [1, 128], strides = [1, 1]} : vector<7x128xf32> to vector<1x128xf32>
    %55 = vector.broadcast %54 : vector<1x128xf32> to vector<32x128xf32>
    %56 = arith.mulf %53, %55 : vector<32x128xf32>
    %57 = arith.truncf %56 : vector<32x128xf32> to vector<32x128xbf16>
    %c1_i32 = arith.constant 1 : i32
    %58 = tpu.dynamic_rotate %46 by %c1_i32 dim 1 : vector<32x128xf32>, i32 -> vector<32x128xf32>
    %59 = vector.extract_strided_slice %47 {offsets = [2, 0], sizes = [1, 128], strides = [1, 1]} : vector<7x128xf32> to vector<1x128xf32>
    %60 = vector.broadcast %59 : vector<1x128xf32> to vector<32x128xf32>
    %61 = arith.mulf %58, %60 : vector<32x128xf32>
    %62 = arith.truncf %61 : vector<32x128xf32> to vector<32x128xbf16>
    %63 = arith.truncf %46 : vector<32x128xf32> to vector<32x128xbf16>
    %c127_i32 = arith.constant 127 : i32
    %64 = tpu.dynamic_rotate %46 by %c127_i32 dim 1 : vector<32x128xf32>, i32 -> vector<32x128xf32>
    %65 = vector.extract_strided_slice %47 {offsets = [4, 0], sizes = [1, 128], strides = [1, 1]} : vector<7x128xf32> to vector<1x128xf32>
    %66 = vector.broadcast %65 : vector<1x128xf32> to vector<32x128xf32>
    %67 = arith.mulf %64, %66 : vector<32x128xf32>
    %68 = arith.truncf %67 : vector<32x128xf32> to vector<32x128xbf16>
    %c126_i32 = arith.constant 126 : i32
    %69 = tpu.dynamic_rotate %46 by %c126_i32 dim 1 : vector<32x128xf32>, i32 -> vector<32x128xf32>
    %70 = vector.extract_strided_slice %47 {offsets = [5, 0], sizes = [1, 128], strides = [1, 1]} : vector<7x128xf32> to vector<1x128xf32>
    %71 = vector.broadcast %70 : vector<1x128xf32> to vector<32x128xf32>
    %72 = arith.mulf %69, %71 : vector<32x128xf32>
    %73 = arith.truncf %72 : vector<32x128xf32> to vector<32x128xbf16>
    %c125_i32 = arith.constant 125 : i32
    %74 = tpu.dynamic_rotate %46 by %c125_i32 dim 1 : vector<32x128xf32>, i32 -> vector<32x128xf32>
    %75 = vector.extract_strided_slice %47 {offsets = [6, 0], sizes = [1, 128], strides = [1, 1]} : vector<7x128xf32> to vector<1x128xf32>
    %76 = vector.broadcast %75 : vector<1x128xf32> to vector<32x128xf32>
    %77 = arith.mulf %74, %76 : vector<32x128xf32>
    %78 = arith.truncf %77 : vector<32x128xf32> to vector<32x128xbf16>
    %79 = tpu.concatenate %52, %57, %62, %63, %68, %73, %78 in 0 : vector<32x128xbf16>, vector<32x128xbf16>, vector<32x128xbf16>, vector<32x128xbf16>, vector<32x128xbf16>, vector<32x128xbf16>, vector<32x128xbf16> -> vector<224x128xbf16>
    %c256_21 = arith.constant 256 : index
    %c0_22 = arith.constant 0 : index
    %80 = vector.load %arg2[%c256_21, %c0_22] : memref<816x128xbf16, #tpu.memory_space<vmem>>, vector<224x16xbf16>
    %cst_23 = arith.constant dense<0.000000e+00> : vector<16x128xf32>
    %81 = tpu.matmul %80, %79, %cst_23 {dimension_numbers = #tpu.dot_dimension_numbers<[0], [0], [1], [1], [0, 1, 1, 1], [], []>} : vector<224x16xbf16>, vector<224x128xbf16>, vector<16x128xf32> -> vector<16x128xf32>
    %c272 = arith.constant 272 : index
    %c0_24 = arith.constant 0 : index
    %82 = vector.load %arg3[%c272, %c0_24] : memref<336x128xf32, #tpu.memory_space<vmem>>, vector<16x128xf32>
    %83 = arith.addf %81, %82 : vector<16x128xf32>
    %cst_25 = arith.constant 0.000000e+00 : f32
    %84 = vector.broadcast %cst_25 : f32 to vector<16x128xf32>
    %85 = arith.subf %84, %83 : vector<16x128xf32>
    %86 = math.exp %85 : vector<16x128xf32>
    %cst_26 = arith.constant 1.000000e+00 : f32
    %87 = vector.broadcast %cst_26 : f32 to vector<16x128xf32>
    %88 = arith.addf %87, %86 : vector<16x128xf32>
    %89 = tpu.reciprocal %88 {approx = true} : vector<16x128xf32> -> vector<16x128xf32>
    %90 = arith.mulf %83, %89 : vector<16x128xf32>
    %c3_i32_27 = arith.constant 3 : i32
    %91 = tpu.dynamic_rotate %90 by %c3_i32_27 dim 1 : vector<16x128xf32>, i32 -> vector<16x128xf32>
    %92 = vector.extract_strided_slice %47 {offsets = [0, 0], sizes = [1, 128], strides = [1, 1]} : vector<7x128xf32> to vector<1x128xf32>
    %93 = vector.broadcast %92 : vector<1x128xf32> to vector<16x128xf32>
    %94 = arith.mulf %91, %93 : vector<16x128xf32>
    %95 = arith.truncf %94 : vector<16x128xf32> to vector<16x128xbf16>
    %c2_i32_28 = arith.constant 2 : i32
    %96 = tpu.dynamic_rotate %90 by %c2_i32_28 dim 1 : vector<16x128xf32>, i32 -> vector<16x128xf32>
    %97 = vector.extract_strided_slice %47 {offsets = [1, 0], sizes = [1, 128], strides = [1, 1]} : vector<7x128xf32> to vector<1x128xf32>
    %98 = vector.broadcast %97 : vector<1x128xf32> to vector<16x128xf32>
    %99 = arith.mulf %96, %98 : vector<16x128xf32>
    %100 = arith.truncf %99 : vector<16x128xf32> to vector<16x128xbf16>
    %c1_i32_29 = arith.constant 1 : i32
    %101 = tpu.dynamic_rotate %90 by %c1_i32_29 dim 1 : vector<16x128xf32>, i32 -> vector<16x128xf32>
    %102 = vector.extract_strided_slice %47 {offsets = [2, 0], sizes = [1, 128], strides = [1, 1]} : vector<7x128xf32> to vector<1x128xf32>
    %103 = vector.broadcast %102 : vector<1x128xf32> to vector<16x128xf32>
    %104 = arith.mulf %101, %103 : vector<16x128xf32>
    %105 = arith.truncf %104 : vector<16x128xf32> to vector<16x128xbf16>
    %106 = arith.truncf %90 : vector<16x128xf32> to vector<16x128xbf16>
    %c127_i32_30 = arith.constant 127 : i32
    %107 = tpu.dynamic_rotate %90 by %c127_i32_30 dim 1 : vector<16x128xf32>, i32 -> vector<16x128xf32>
    %108 = vector.extract_strided_slice %47 {offsets = [4, 0], sizes = [1, 128], strides = [1, 1]} : vector<7x128xf32> to vector<1x128xf32>
    %109 = vector.broadcast %108 : vector<1x128xf32> to vector<16x128xf32>
    %110 = arith.mulf %107, %109 : vector<16x128xf32>
    %111 = arith.truncf %110 : vector<16x128xf32> to vector<16x128xbf16>
    %c126_i32_31 = arith.constant 126 : i32
    %112 = tpu.dynamic_rotate %90 by %c126_i32_31 dim 1 : vector<16x128xf32>, i32 -> vector<16x128xf32>
    %113 = vector.extract_strided_slice %47 {offsets = [5, 0], sizes = [1, 128], strides = [1, 1]} : vector<7x128xf32> to vector<1x128xf32>
    %114 = vector.broadcast %113 : vector<1x128xf32> to vector<16x128xf32>
    %115 = arith.mulf %112, %114 : vector<16x128xf32>
    %116 = arith.truncf %115 : vector<16x128xf32> to vector<16x128xbf16>
    %c125_i32_32 = arith.constant 125 : i32
    %117 = tpu.dynamic_rotate %90 by %c125_i32_32 dim 1 : vector<16x128xf32>, i32 -> vector<16x128xf32>
    %118 = vector.extract_strided_slice %47 {offsets = [6, 0], sizes = [1, 128], strides = [1, 1]} : vector<7x128xf32> to vector<1x128xf32>
    %119 = vector.broadcast %118 : vector<1x128xf32> to vector<16x128xf32>
    %120 = arith.mulf %117, %119 : vector<16x128xf32>
    %121 = arith.truncf %120 : vector<16x128xf32> to vector<16x128xbf16>
    %122 = tpu.concatenate %95, %100, %105, %106, %111, %116, %121 in 0 : vector<16x128xbf16>, vector<16x128xbf16>, vector<16x128xbf16>, vector<16x128xbf16>, vector<16x128xbf16>, vector<16x128xbf16>, vector<16x128xbf16> -> vector<112x128xbf16>
    %c480 = arith.constant 480 : index
    %c0_33 = arith.constant 0 : index
    %123 = vector.load %arg2[%c480, %c0_33] : memref<816x128xbf16, #tpu.memory_space<vmem>>, vector<112x1xbf16>
    %cst_34 = arith.constant dense<0.000000e+00> : vector<1x128xf32>
    %124 = tpu.matmul %123, %122, %cst_34 {dimension_numbers = #tpu.dot_dimension_numbers<[0], [0], [1], [1], [0, 1, 1, 1], [], []>} : vector<112x1xbf16>, vector<112x128xbf16>, vector<1x128xf32> -> vector<1x128xf32>
    %c288 = arith.constant 288 : index
    %c0_35 = arith.constant 0 : index
    %125 = vector.load %arg3[%c288, %c0_35] : memref<336x128xf32, #tpu.memory_space<vmem>>, vector<1x128xf32>
    %126 = arith.addf %124, %125 : vector<1x128xf32>
    %cst_36 = arith.constant 0.000000e+00 : f32
    %127 = vector.broadcast %cst_36 : f32 to vector<1x128xf32>
    %128 = arith.subf %127, %126 : vector<1x128xf32>
    %129 = math.exp %128 : vector<1x128xf32>
    %cst_37 = arith.constant 1.000000e+00 : f32
    %130 = vector.broadcast %cst_37 : f32 to vector<1x128xf32>
    %131 = arith.addf %130, %129 : vector<1x128xf32>
    %132 = tpu.reciprocal %131 {approx = true} : vector<1x128xf32> -> vector<1x128xf32>
    %133 = arith.mulf %126, %132 : vector<1x128xf32>
    %134 = arith.truncf %133 : vector<1x128xf32> to vector<1x128xbf16>
    %c592 = arith.constant 592 : index
    %c0_38 = arith.constant 0 : index
    %135 = vector.load %arg2[%c592, %c0_38] : memref<816x128xbf16, #tpu.memory_space<vmem>>, vector<128x64xbf16>
    %cst_39 = arith.constant dense<0.000000e+00> : vector<1x64xf32>
    %136 = tpu.matmul %134, %135, %cst_39 {dimension_numbers = #tpu.dot_dimension_numbers<[1], [0], [0], [1], [0, 0, 1, 1], [], []>} : vector<1x128xbf16>, vector<128x64xbf16>, vector<1x64xf32> -> vector<1x64xf32>
    %c296 = arith.constant 296 : index
    %c0_40 = arith.constant 0 : index
    %137 = vector.load %arg3[%c296, %c0_40] : memref<336x128xf32, #tpu.memory_space<vmem>>, vector<1x64xf32>
    %138 = arith.addf %136, %137 : vector<1x64xf32>
    %cst_41 = arith.constant 0.000000e+00 : f32
    %139 = vector.broadcast %cst_41 : f32 to vector<1x64xf32>
    %140 = arith.subf %139, %138 : vector<1x64xf32>
    %141 = math.exp %140 : vector<1x64xf32>
    %cst_42 = arith.constant 1.000000e+00 : f32
    %142 = vector.broadcast %cst_42 : f32 to vector<1x64xf32>
    %143 = arith.addf %142, %141 : vector<1x64xf32>
    %144 = tpu.reciprocal %143 {approx = true} : vector<1x64xf32> -> vector<1x64xf32>
    %145 = arith.mulf %138, %144 : vector<1x64xf32>
    %146 = arith.truncf %145 : vector<1x64xf32> to vector<1x64xbf16>
    %c720 = arith.constant 720 : index
    %c0_43 = arith.constant 0 : index
    %147 = vector.load %arg2[%c720, %c0_43] : memref<816x128xbf16, #tpu.memory_space<vmem>>, vector<64x32xbf16>
    %cst_44 = arith.constant dense<0.000000e+00> : vector<1x32xf32>
    %148 = tpu.matmul %146, %147, %cst_44 {dimension_numbers = #tpu.dot_dimension_numbers<[1], [0], [0], [1], [0, 0, 1, 1], [], []>} : vector<1x64xbf16>, vector<64x32xbf16>, vector<1x32xf32> -> vector<1x32xf32>
    %c304 = arith.constant 304 : index
    %c0_45 = arith.constant 0 : index
    %149 = vector.load %arg3[%c304, %c0_45] : memref<336x128xf32, #tpu.memory_space<vmem>>, vector<1x32xf32>
    %150 = arith.addf %148, %149 : vector<1x32xf32>
    %cst_46 = arith.constant 0.000000e+00 : f32
    %151 = vector.broadcast %cst_46 : f32 to vector<1x32xf32>
    %152 = arith.subf %151, %150 : vector<1x32xf32>
    %153 = math.exp %152 : vector<1x32xf32>
    %cst_47 = arith.constant 1.000000e+00 : f32
    %154 = vector.broadcast %cst_47 : f32 to vector<1x32xf32>
    %155 = arith.addf %154, %153 : vector<1x32xf32>
    %156 = tpu.reciprocal %155 {approx = true} : vector<1x32xf32> -> vector<1x32xf32>
    %157 = arith.mulf %150, %156 : vector<1x32xf32>
    %158 = arith.truncf %157 : vector<1x32xf32> to vector<1x32xbf16>
    %c784 = arith.constant 784 : index
    %c0_48 = arith.constant 0 : index
    %159 = vector.load %arg2[%c784, %c0_48] : memref<816x128xbf16, #tpu.memory_space<vmem>>, vector<32x128xbf16>
    %cst_49 = arith.constant dense<0.000000e+00> : vector<1x128xf32>
    %160 = tpu.matmul %158, %159, %cst_49 {dimension_numbers = #tpu.dot_dimension_numbers<[1], [0], [0], [1], [0, 0, 1, 1], [], []>} : vector<1x32xbf16>, vector<32x128xbf16>, vector<1x128xf32> -> vector<1x128xf32>
    %c312 = arith.constant 312 : index
    %c0_50 = arith.constant 0 : index
    %161 = vector.load %arg3[%c312, %c0_50] : memref<336x128xf32, #tpu.memory_space<vmem>>, vector<1x128xf32>
    %162 = arith.addf %160, %161 : vector<1x128xf32>
    %cst_51 = arith.constant 0.000000e+00 : f32
    %163 = vector.broadcast %cst_51 : f32 to vector<1x128xf32>
    %164 = arith.maximumf %162, %163 : vector<1x128xf32>
    %165 = math.absf %162 : vector<1x128xf32>
    %cst_52 = arith.constant 0.000000e+00 : f32
    %166 = vector.broadcast %cst_52 : f32 to vector<1x128xf32>
    %167 = arith.subf %166, %165 : vector<1x128xf32>
    %168 = math.exp %167 : vector<1x128xf32>
    %cst_53 = arith.constant 1.000000e+00 : f32
    %169 = vector.broadcast %cst_53 : f32 to vector<1x128xf32>
    %170 = arith.addf %169, %168 : vector<1x128xf32>
    %171 = math.log %170 : vector<1x128xf32>
    %172 = arith.addf %164, %171 : vector<1x128xf32>
    %c320 = arith.constant 320 : index
    %c0_54 = arith.constant 0 : index
    %173 = vector.load %arg3[%c320, %c0_54] : memref<336x128xf32, #tpu.memory_space<vmem>>, vector<1x128xf32>
    %174 = arith.mulf %172, %173 : vector<1x128xf32>
    %c328 = arith.constant 328 : index
    %c0_55 = arith.constant 0 : index
    %175 = vector.load %arg3[%c328, %c0_55] : memref<336x128xf32, #tpu.memory_space<vmem>>, vector<1x128xf32>
    %176 = arith.addf %174, %175 : vector<1x128xf32>
    %177 = vector.shape_cast %176 : vector<1x128xf32> to vector<1x128xf32>
    %178 = vector.broadcast %177 : vector<1x128xf32> to vector<8x128xf32>
    %c0_56 = arith.constant 0 : index
    %c0_57 = arith.constant 0 : index
    %179 = vector.load %arg4[%c0_56, %c0_57] : memref<8x128xf32, #tpu.memory_space<vmem>>, vector<8x128xf32>
    tpu.vector_store %arg4[%c0_56, %c0_57], %178 {strides = array<i32>} : memref<8x128xf32, #tpu.memory_space<vmem>>, vector<8x128xf32>,
    return
  }
  func.func @transform_0(%arg0: i32) -> (i32, i32) {
    %c0_i32 = arith.constant 0 : i32
    %c0_i32_0 = arith.constant 0 : i32
    return %c0_i32, %arg0 : i32, i32
  }
  func.func @transform_1(%arg0: i32) -> (i32, i32) {
    %c0_i32 = arith.constant 0 : i32
    %c0_i32_0 = arith.constant 0 : i32
    %c0_i32_1 = arith.constant 0 : i32
    return %c0_i32, %c0_i32_0 : i32, i32
  }
  func.func @transform_2(%arg0: i32) -> (i32, i32) {
    %c0_i32 = arith.constant 0 : i32
    %c0_i32_0 = arith.constant 0 : i32
    %c0_i32_1 = arith.constant 0 : i32
    return %c0_i32, %c0_i32_0 : i32, i32
  }
  func.func @transform_3(%arg0: i32) -> (i32, i32) {
    %c0_i32 = arith.constant 0 : i32
    %c0_i32_0 = arith.constant 0 : i32
    return %arg0, %c0_i32 : i32, i32
  }
}

</mosaic_0001>

<llo_original>
// kernel: tile.36
$region0: #{tile.36}
  #allocation0 [shape = 's32[1]{0}', space=sflag, size = 0x4, scoped, tag = 'scoped memory for tile.36']
  %s0 = inlined_call_operand.vmem [shape: f32[32], index: 0, kind: input, shape index: {}]
  %s1 = inlined_call_operand.vmem [shape: f32[4,32], index: 1, kind: output, shape index: {}]
  // Predicated region
  $region2: #{tile.36} parent=0 // pred_check
    _
  $region3: #{tile.36} parent=0 // pred_check_branch
    %3 = sbr.rel (0) target = $region5
  $region4: #{tile.36} parent=0 // pred_region
    _
  $region5: #{tile.36} parent=0 // pred_fallthru
    _
  %v4 = vld [vmem:[%s0] ss:$0 sm:$0xff]
  %5 = vst [vmem:[%s1] sm:$0xf] %v4

// kernel: tile.56
$region0: #{tile.56}
  #allocation0 [shape = 's32[1]{0}', space=sflag, size = 0x4, scoped, tag = 'scoped memory for tile.56']
  %s0 = inlined_call_operand.vmem [shape: f32[16], index: 0, kind: input, shape index: {}]
  %s1 = inlined_call_operand.vmem [shape: f32[4,16], index: 1, kind: output, shape index: {}]
  // Predicated region
  $region2: #{tile.56} parent=0 // pred_check
    _
  $region3: #{tile.56} parent=0 // pred_check_branch
    %3 = sbr.rel (0) target = $region5
  $region4: #{tile.56} parent=0 // pred_region
    _
  $region5: #{tile.56} parent=0 // pred_fallthru
    _
  %v4 = vld [vmem:[%s0] ss:$0 sm:$0xff]
  %5 = vst [vmem:[%s1] sm:$0xf] %v4

// kernel: tile.61
$region0: #{tile.61}
  #allocation0 [shape = 's32[1]{0}', space=sflag, size = 0x4, scoped, tag = 'scoped memory for tile.61']
  %s0 = inlined_call_operand.vmem [shape: f32[8], index: 0, kind: input, shape index: {}]
  %s1 = inlined_call_operand.vmem [shape: f32[4,8], index: 1, kind: output, shape index: {}]
  // Predicated region
  $region2: #{tile.61} parent=0 // pred_check
    _
  $region3: #{tile.61} parent=0 // pred_check_branch
    %3 = sbr.rel (0) target = $region5
  $region4: #{tile.61} parent=0 // pred_region
    _
  $region5: #{tile.61} parent=0 // pred_fallthru
    _
  %v4 = vld [vmem:[%s0] ss:$0 sm:$0xff]
  %5 = vst [vmem:[%s1] sm:$0xf] %v4

// kernel: tile.66
$region0: #{tile.66}
  #allocation0 [shape = 's32[1]{0}', space=sflag, size = 0x4, scoped, tag = 'scoped memory for tile.66']
  %s0 = inlined_call_operand.vmem [shape: f32[2], index: 0, kind: input, shape index: {}]
  %s1 = inlined_call_operand.vmem [shape: f32[4,2], index: 1, kind: output, shape index: {}]
  // Predicated region
  $region2: #{tile.66} parent=0 // pred_check
    _
  $region3: #{tile.66} parent=0 // pred_check_branch
    %3 = sbr.rel (0) target = $region5
  $region4: #{tile.66} parent=0 // pred_region
    _
  $region5: #{tile.66} parent=0 // pred_fallthru
    _
  %v4 = vld [vmem:[%s0] ss:$0 sm:$0xff]
  %5 = vst [vmem:[%s1] sm:$0xf] %v4

// kernel: nowcast_pnn_forward.1
$region0: #{nowcast_pnn_forward.1}
  #allocation0 [shape = 'u32[]', space=smem, size = 0x4, offset = 0x4, fixed_abs, tag = 'smem constant byte address 0x4 - core index']
  #allocation1 [shape = 'u32[144,128]{1,0:T(1,128)}', space=vmem, size = 0x12000, scoped, tag = 'internal scratch']
  %s0 = inlined_call_operand.vmem [shape: f32[32,128], index: 0, kind: input, shape index: {}]
  %s1 = inlined_call_operand.vmem [shape: bf16[816,128], index: 1, kind: input, shape index: {}]
  %s2 = inlined_call_operand.vmem [shape: f32[336,128], index: 2, kind: input, shape index: {}]
  %s3 = inlined_call_operand.vmem [shape: f32[8,128], index: 3, kind: output, shape index: {}]
  %s4 = sld [smem:[#allocation0]]
  $region22: #{nowcast_pnn_forward.1} parent=0
    _
  %s6 = ssub.s32 1, %s4
  %s7 = scalar_select 0, %s6, %s4
  // Predicated region
  $region2: #{nowcast_pnn_forward.1} parent=0 // pred_check
    _
  $region3: #{nowcast_pnn_forward.1} parent=0 // pred_check_branch
    %9 = sbr.rel (0) target = $region5
  $region4: #{nowcast_pnn_forward.1} parent=0 // pred_region
    _
  $region5: #{nowcast_pnn_forward.1} parent=0 // pred_fallthru
    _
  // Predicated region
  $region6: #{nowcast_pnn_forward.1} parent=0 // pred_check
    _
  $region7: #{nowcast_pnn_forward.1} parent=0 // pred_check_branch
    %11 = sbr.rel (0) target = $region9
  $region8: #{nowcast_pnn_forward.1} parent=0 // pred_region
    _
  $region9: #{nowcast_pnn_forward.1} parent=0 // pred_fallthru
    _
  // Predicated region
  $region10: #{nowcast_pnn_forward.1} parent=0 // pred_check
    _
  $region11: #{nowcast_pnn_forward.1} parent=0 // pred_check_branch
    %13 = sbr.rel (0) target = $region13
  $region12: #{nowcast_pnn_forward.1} parent=0 // pred_region
    _
  $region13: #{nowcast_pnn_forward.1} parent=0 // pred_fallthru
    _
  %v15 = vld [vmem:[%s0] sm:$0xff]
  %v16 = vld [vmem:[%s0 + $0x8] sm:$0xff]
  %v17 = vld [vmem:[%s0 + $0x10] sm:$0xff]
  %v18 = vld [vmem:[%s0 + $0x18] sm:$0xff]
  %v19 = vpack.c.bf16 %v16, %v15
  %v20 = vpack.c.bf16 %v18, %v17
  %v21 = vld [vmem:[%s1] sm:$0xf]
  %v22 = vld [vmem:[%s1 + $0x4] sm:$0xf]
  %v23 = vld [vmem:[%s1 + $0x8] sm:$0xf]
  %v24 = vld [vmem:[%s1 + $0xc] sm:$0xf]
  %v25 = vld [vmem:[%s1 + $0x10] sm:$0xf]
  %v26 = vld [vmem:[%s1 + $0x14] sm:$0xf]
  %v27 = vld [vmem:[%s1 + $0x18] sm:$0xf]
  %v28 = vld [vmem:[%s1 + $0x1c] sm:$0xf]
  %v29 = vld [vmem:[%s1 + $0x20] sm:$0xf]
  %v30 = vld [vmem:[%s1 + $0x24] sm:$0xf]
  %v31 = vld [vmem:[%s1 + $0x28] sm:$0xf]
  %v32 = vld [vmem:[%s1 + $0x2c] sm:$0xf]
  %v33 = vld [vmem:[%s2 + $0x80] sm:$0xff]
  %v34 = vld [vmem:[%s2 + $0x88] sm:$0xff]
  %v35 = vld [vmem:[%s2 + $0x90] sm:$0xff]
  %v36 = vld [vmem:[%s2 + $0x98] sm:$0xff]
  %v37 = vld [vmem:[%s2 + $0xa0] sm:$0xff]
  %v38 = vld [vmem:[%s2 + $0xa8] sm:$0xff]
  %v39 = vld [vmem:[%s2 + $0xb0] sm:$0xff]
  %v40 = vld [vmem:[%s2 + $0xb8] sm:$0xff]
  %v41 = vld [vmem:[%s2 + $0xc0] sm:$0xff]
  %v42 = vld [vmem:[%s2 + $0xc8] sm:$0xff]
  %v43 = vld [vmem:[%s2 + $0xd0] sm:$0xff]
  %v44 = vld [vmem:[%s2 + $0xd8] sm:$0xff]
  %v57 = vunpack.c.l.b16 %v21
  %v58 = vunpack.c.l.b16 %v22
  %v59 = vunpack.c.l.b16 %v23
  %v60 = vunpack.c.l.b16 %v24
  %v61 = vunpack.c.l.b16 %v25
  %v62 = vunpack.c.l.b16 %v26
  %v63 = vunpack.c.l.b16 %v27
  %v64 = vunpack.c.l.b16 %v28
  %v65 = vunpack.c.l.b16 %v29
  %v66 = vunpack.c.l.b16 %v30
  %v67 = vunpack.c.l.b16 %v31
  %v68 = vunpack.c.l.b16 %v32
  %v69 = vpack.c.b16 %v58, %v57
  %v70 = vpack.c.b16 %v60, %v59
  %v71 = vpack.c.b16 %v62, %v61
  %v72 = vpack.c.b16 %v64, %v63
  %v73 = vpack.c.b16 %v66, %v65
  %v74 = vpack.c.b16 %v68, %v67
  %vm75 = vcmask 261120
  %v77 = vsel %vm75, %v69, 0
  %v80 = vsel %vm75, %v70, 0
  %v83 = vsel %vm75, %v71, 0
  %v86 = vsel %vm75, %v72, 0
  %v89 = vsel %vm75, %v73, 0
  %v92 = vsel %vm75, %v74, 0
  %94 = vmatprep.subr.bf16.mxu0 0
  %95 = vmatpush1.bf16.msra.mxu0 %v19
  %96 = vmatprep.subr.bf16.mxu0 0
  %97 = vmatpush1.bf16.msra.mxu0 %v20
  %98 = vmatprep.subr.bf16.mxu0 0
  %99 = vmatpush1.bf16.msra.mxu0 0
  %100 = vmatprep.subr.bf16.mxu0 0
  %101 = vmatpush1.bf16.msra.mxu0 0
  %102 = vmatprep.subr.bf16.mxu0 0
  %103 = vmatpush1.bf16.msra.mxu0 0
  %104 = vmatprep.subr.bf16.mxu0 0
  %105 = vmatpush1.bf16.msra.mxu0 0
  %106 = vmatprep.subr.bf16.mxu0 0
  %107 = vmatpush1.bf16.msra.mxu0 0
  %108 = vmatprep.subr.bf16.mxu0 0
  %109 = vmatpush1.bf16.msra.mxu0 0
  %110 = vmatprep.subr.bf16.mxu0 0
  %111 = vmatpush1.bf16.msra.mxu0 0
  %112 = vmatprep.subr.bf16.mxu0 0
  %113 = vmatpush1.bf16.msra.mxu0 0
  %114 = vmatprep.subr.bf16.mxu0 0
  %115 = vmatpush1.bf16.msra.mxu0 0
  %116 = vmatprep.subr.bf16.mxu0 0
  %117 = vmatpush1.bf16.msra.mxu0 0
  %118 = vmatprep.subr.bf16.mxu0 0
  %119 = vmatpush1.bf16.msra.mxu0 0
  %120 = vmatprep.subr.bf16.mxu0 0
  %121 = vmatpush1.bf16.msra.mxu0 0
  %122 = vmatprep.subr.bf16.mxu0 0
  %123 = vmatpush1.bf16.msra.mxu0 0
  %124 = vmatprep.subr.bf16.mxu0 0
  %125 = vmatpush1.bf16.msra.mxu0 0
  %126 = vmatprep.mubr.bf16.mxu0 0
  %127 = vmatmul.mubr.bf16.gmra.mrb[0].mxu0 %v77
  %v128 = vpop.f32.mrb[0].mxu0
  %v129 = vadd.f32 %v33, %v128
  %v130 = vpop.f32.mrb[0].mxu0
  %v131 = vpop.f32.mrb[0].mxu0
  %v132 = vadd.f32 %v34, %v131
  %v133 = vpop.f32.mrb[0].mxu0
  %134 = vmatprep.mubr.bf16.mxu0 0
  %135 = vmatmul.mubr.bf16.gmra.mrb[0].mxu0 %v80
  %v136 = vpop.f32.mrb[0].mxu0
  %v137 = vadd.f32 %v35, %v136
  %v138 = vpop.f32.mrb[0].mxu0
  %v139 = vpop.f32.mrb[0].mxu0
  %v140 = vadd.f32 %v36, %v139
  %v141 = vpop.f32.mrb[0].mxu0
  %142 = vmatprep.mubr.bf16.mxu0 0
  %143 = vmatmul.mubr.bf16.gmra.mrb[0].mxu0 %v83
  %v144 = vpop.f32.mrb[0].mxu0
  %v145 = vadd.f32 %v37, %v144
  %v146 = vpop.f32.mrb[0].mxu0
  %v147 = vpop.f32.mrb[0].mxu0
  %v148 = vadd.f32 %v38, %v147
  %v149 = vpop.f32.mrb[0].mxu0
  %150 = vmatprep.mubr.bf16.mxu0 0
  %151 = vmatmul.mubr.bf16.gmra.mrb[0].mxu0 %v86
  %v152 = vpop.f32.mrb[0].mxu0
  %v153 = vadd.f32 %v39, %v152
  %v154 = vpop.f32.mrb[0].mxu0
  %v155 = vpop.f32.mrb[0].mxu0
  %v156 = vadd.f32 %v40, %v155
  %v157 = vpop.f32.mrb[0].mxu0
  %158 = vmatprep.mubr.bf16.mxu0 0
  %159 = vmatmul.mubr.bf16.gmra.mrb[0].mxu0 %v89
  %v160 = vpop.f32.mrb[0].mxu0
  %v161 = vadd.f32 %v41, %v160
  %v162 = vpop.f32.mrb[0].mxu0
  %v163 = vpop.f32.mrb[0].mxu0
  %v164 = vadd.f32 %v42, %v163
  %v165 = vpop.f32.mrb[0].mxu0
  %166 = vmatprep.mubr.bf16.mxu0 0
  %167 = vmatmul.mubr.bf16.gmra.mrb[0].mxu0 %v92
  %v168 = vpop.f32.mrb[0].mxu0
  %v169 = vadd.f32 %v43, %v168
  %v170 = vpop.f32.mrb[0].mxu0
  %v171 = vpop.f32.mrb[0].mxu0
  %v172 = vadd.f32 %v44, %v171
  %v173 = vpop.f32.mrb[0].mxu0
  %174 = vdwg.mxu0
  %v175 = vpack.c.bf16 %v148, %v145
  %v176 = vpack.c.bf16 %v156, %v153
  %v177 = vpack.c.bf16 %v132, %v129
  %v178 = vpack.c.bf16 %v140, %v137
  %v179 = vld [vmem:[%s2] sm:$0xff]
  %v180 = vld [vmem:[%s2 + $0x8] sm:$0xff]
  %v181 = vld [vmem:[%s2 + $0x10] sm:$0xff]
  %v182 = vld [vmem:[%s2 + $0x18] sm:$0xff]
  %v183 = vld [vmem:[%s2 + $0x20] sm:$0xff]
  %v184 = vld [vmem:[%s2 + $0x28] sm:$0xff]
  %v185 = vld [vmem:[%s2 + $0x30] sm:$0xff]
  %v186 = vld [vmem:[%s2 + $0x38] sm:$0xff]
  %v187 = vld [vmem:[%s2 + $0x40] sm:$0xff]
  %v188 = vld [vmem:[%s2 + $0x48] sm:$0xff]
  %v189 = vld [vmem:[%s2 + $0x50] sm:$0xff]
  %v190 = vld [vmem:[%s2 + $0x58] sm:$0xff]
  %v191 = vld [vmem:[%s2 + $0x60] sm:$0xff]
  %v192 = vld [vmem:[%s2 + $0x68] sm:$0xff]
  %v193 = vld [vmem:[%s2 + $0x70] sm:$0xff]
  %v194 = vld [vmem:[%s2 + $0x78] sm:$0xff]
  %195 = vxpose.xlu0.c.b16.start [1/8] %v175, 128
  %196 = vxpose.xlu0.c.b16.cont [2/8] %v176, 128
  %197 = vxpose.xlu0.c.b16.cont [3/8] 0, 128
  %198 = vxpose.xlu0.c.b16.cont [4/8] 0, 128
  %199 = vxpose.xlu0.c.b16.cont [5/8] 0, 128
  %200 = vxpose.xlu0.c.b16.cont [6/8] 0, 128
  %201 = vxpose.xlu0.c.b16.cont [7/8] 0, 128
  %202 = vxpose.xlu0.c.b16.end [8/8] 0, 128
  %v203 = vpop.trf.xlu0
  %v204 = vpop.trf.xlu0
  %v205 = vpop.trf.xlu0
  %v206 = vpop.trf.xlu0
  %v207 = vpop.trf.xlu0
  %v208 = vpop.trf.xlu0
  %v209 = vpop.trf.xlu0
  %v210 = vpop.trf.xlu0
  %v212 = vsel %vm75, %v203, 0
  %v215 = vsel %vm75, %v204, 0
  %v218 = vsel %vm75, %v205, 0
  %v221 = vsel %vm75, %v206, 0
  %v224 = vsel %vm75, %v207, 0
  %v227 = vsel %vm75, %v208, 0
  %v230 = vsel %vm75, %v209, 0
  %v233 = vsel %vm75, %v210, 0
  %235 = vmatprep.subr.bf16.mxu0 0
  %236 = vmatpush1.bf16.msra.mxu0 %v177
  %237 = vmatprep.subr.bf16.mxu0 0
  %238 = vmatpush1.bf16.msra.mxu0 %v178
  %239 = vmatprep.subr.bf16.mxu0 0
  %240 = vmatpush1.bf16.msra.mxu0 0
  %241 = vmatprep.subr.bf16.mxu0 0
  %242 = vmatpush1.bf16.msra.mxu0 0
  %243 = vmatprep.subr.bf16.mxu0 0
  %244 = vmatpush1.bf16.msra.mxu0 0
  %245 = vmatprep.subr.bf16.mxu0 0
  %246 = vmatpush1.bf16.msra.mxu0 0
  %247 = vmatprep.subr.bf16.mxu0 0
  %248 = vmatpush1.bf16.msra.mxu0 0
  %249 = vmatprep.subr.bf16.mxu0 0
  %250 = vmatpush1.bf16.msra.mxu0 0
  %251 = vmatprep.subr.bf16.mxu0 0
  %252 = vmatpush1.bf16.msra.mxu0 0
  %253 = vmatprep.subr.bf16.mxu0 0
  %254 = vmatpush1.bf16.msra.mxu0 0
  %255 = vmatprep.subr.bf16.mxu0 0
  %256 = vmatpush1.bf16.msra.mxu0 0
  %257 = vmatprep.subr.bf16.mxu0 0
  %258 = vmatpush1.bf16.msra.mxu0 0
  %259 = vmatprep.subr.bf16.mxu0 0
  %260 = vmatpush1.bf16.msra.mxu0 0
  %261 = vmatprep.subr.bf16.mxu0 0
  %262 = vmatpush1.bf16.msra.mxu0 0
  %263 = vmatprep.subr.bf16.mxu0 0
  %264 = vmatpush1.bf16.msra.mxu0 0
  %265 = vmatprep.subr.bf16.mxu0 0
  %266 = vmatpush1.bf16.msra.mxu0 0
  %267 = vmatprep.mubr.bf16.mxu0 0
  %268 = vmatmul.mubr.bf16.gmra.mrb[0].mxu0 %v212
  %v269 = vpop.f32.mrb[0].mxu0
  %v270 = vadd.f32 %v179, %v269
  %v271 = vpop.f32.mrb[0].mxu0
  %v272 = vpop.f32.mrb[0].mxu0
  %v273 = vadd.f32 %v180, %v272
  %v274 = vpop.f32.mrb[0].mxu0
  %275 = vmatprep.mubr.bf16.mxu0 0
  %276 = vmatmul.mubr.bf16.gmra.mrb[0].mxu0 %v215
  %v277 = vpop.f32.mrb[0].mxu0
  %v278 = vadd.f32 %v181, %v277
  %v279 = vpop.f32.mrb[0].mxu0
  %v280 = vpop.f32.mrb[0].mxu0
  %v281 = vadd.f32 %v182, %v280
  %v282 = vpop.f32.mrb[0].mxu0
  %283 = vmatprep.mubr.bf16.mxu0 0
  %284 = vmatmul.mubr.bf16.gmra.mrb[0].mxu0 %v218
  %v285 = vpop.f32.mrb[0].mxu0
  %v286 = vadd.f32 %v183, %v285
  %v287 = vpop.f32.mrb[0].mxu0
  %v288 = vpop.f32.mrb[0].mxu0
  %v289 = vadd.f32 %v184, %v288
  %v290 = vpop.f32.mrb[0].mxu0
  %291 = vmatprep.mubr.bf16.mxu0 0
  %292 = vmatmul.mubr.bf16.gmra.mrb[0].mxu0 %v221
  %v293 = vpop.f32.mrb[0].mxu0
  %v294 = vadd.f32 %v185, %v293
  %v295 = vpop.f32.mrb[0].mxu0
  %v296 = vpop.f32.mrb[0].mxu0
  %v297 = vadd.f32 %v186, %v296
  %v298 = vpop.f32.mrb[0].mxu0
  %299 = vmatprep.mubr.bf16.mxu0 0
  %300 = vmatmul.mubr.bf16.gmra.mrb[0].mxu0 %v224
  %v301 = vpop.f32.mrb[0].mxu0
  %v302 = vadd.f32 %v187, %v301
  %v303 = vpop.f32.mrb[0].mxu0
  %v304 = vpop.f32.mrb[0].mxu0
  %v305 = vadd.f32 %v188, %v304
  %v306 = vpop.f32.mrb[0].mxu0
  %307 = vmatprep.mubr.bf16.mxu0 0
  %308 = vmatmul.mubr.bf16.gmra.mrb[0].mxu0 %v227
  %v309 = vpop.f32.mrb[0].mxu0
  %v310 = vadd.f32 %v189, %v309
  %v311 = vpop.f32.mrb[0].mxu0
  %v312 = vpop.f32.mrb[0].mxu0
  %v313 = vadd.f32 %v190, %v312
  %v314 = vpop.f32.mrb[0].mxu0
  %315 = vmatprep.mubr.bf16.mxu0 0
  %316 = vmatmul.mubr.bf16.gmra.mrb[0].mxu0 %v230
  %v317 = vpop.f32.mrb[0].mxu0
  %v318 = vadd.f32 %v191, %v317
  %v319 = vpop.f32.mrb[0].mxu0
  %v320 = vpop.f32.mrb[0].mxu0
  %v321 = vadd.f32 %v192, %v320
  %v322 = vpop.f32.mrb[0].mxu0
  %323 = vmatprep.mubr.bf16.mxu0 0
  %324 = vmatmul.mubr.bf16.gmra.mrb[0].mxu0 %v233
  %v325 = vpop.f32.mrb[0].mxu0
  %v326 = vadd.f32 %v193, %v325
  %v327 = vpop.f32.mrb[0].mxu0
  %v328 = vpop.f32.mrb[0].mxu0
  %v329 = vadd.f32 %v194, %v328
  %v330 = vpop.f32.mrb[0].mxu0
  %331 = vdwg.mxu0
  %v332 = vmax.f32 %v270, %v286
  %v333 = vmax.f32 %v273, %v289
  %v334 = vmax.f32 %v278, %v294
  %v335 = vmax.f32 %v281, %v297
  %v336 = vmax.f32 %v332, %v302
  %v337 = vmax.f32 %v333, %v305
  %v338 = vmax.f32 %v334, %v310
  %v339 = vmax.f32 %v335, %v313
  %v340 = vmax.f32 %v336, %v318
  %v341 = vmax.f32 %v337, %v321
  %v342 = vmax.f32 %v338, %v326
  %v343 = vmax.f32 %v339, %v329
  %v344 = vmax.f32 %v340, %v341
  %v345 = vmax.f32 %v342, %v343
  %v346 = vmax.f32 %v344, %v345
  %v347 = vrot.slane %v346, 4
  %v348 = vmax.f32 %v346, %v347
  %v349 = vrot.slane %v348, 2
  %v350 = vmax.f32 %v348, %v349
  %v351 = vrot.slane %v350, 1
  %v352 = vmax.f32 %v350, %v351
  %v353 = vsub.f32 %v270, %v352
  %v354 = vsub.f32 %v273, %v352
  %v355 = vsub.f32 %v278, %v352
  %v356 = vsub.f32 %v281, %v352
  %v357 = vsub.f32 %v286, %v352
  %v358 = vsub.f32 %v289, %v352
  %v359 = vsub.f32 %v294, %v352
  %v360 = vsub.f32 %v297, %v352
  %v361 = vsub.f32 %v302, %v352
  %v362 = vsub.f32 %v305, %v352
  %v363 = vsub.f32 %v310, %v352
  %v364 = vsub.f32 %v313, %v352
  %v365 = vsub.f32 %v318, %v352
  %v366 = vsub.f32 %v321, %v352
  %v367 = vsub.f32 %v326, %v352
  %v368 = vsub.f32 %v329, %v352
  %v369 = vmul.f32 %v353, 1.442695
  %v370 = vpow.pop %v369
  %v371 = vmul.f32 %v354, 1.442695
  %v372 = vpow.pop %v371
  %v373 = vmul.f32 %v355, 1.442695
  %v374 = vpow.pop %v373
  %v375 = vmul.f32 %v356, 1.442695
  %v376 = vpow.pop %v375
  %v377 = vmul.f32 %v357, 1.442695
  %v378 = vpow.pop %v377
  %v379 = vmul.f32 %v358, 1.442695
  %v380 = vpow.pop %v379
  %v381 = vmul.f32 %v359, 1.442695
  %v382 = vpow.pop %v381
  %v383 = vmul.f32 %v360, 1.442695
  %v384 = vpow.pop %v383
  %v385 = vmul.f32 %v361, 1.442695
  %v386 = vpow.pop %v385
  %v387 = vmul.f32 %v362, 1.442695
  %v388 = vpow.pop %v387
  %v389 = vmul.f32 %v363, 1.442695
  %v390 = vpow.pop %v389
  %v391 = vmul.f32 %v364, 1.442695
  %v392 = vpow.pop %v391
  %v393 = vmul.f32 %v365, 1.442695
  %v394 = vpow.pop %v393
  %v395 = vmul.f32 %v366, 1.442695
  %v396 = vpow.pop %v395
  %v397 = vmul.f32 %v367, 1.442695
  %v398 = vpow.pop %v397
  %v399 = vmul.f32 %v368, 1.442695
  %v400 = vpow.pop %v399
  %v401 = vadd.f32 %v370, %v372
  %v402 = vadd.f32 %v401, %v374
  %v403 = vadd.f32 %v402, %v376
  %v404 = vadd.f32 %v403, %v378
  %v405 = vadd.f32 %v404, %v380
  %v406 = vadd.f32 %v405, %v382
  %v407 = vadd.f32 %v406, %v384
  %v408 = vadd.f32 %v407, %v386
  %v409 = vadd.f32 %v408, %v388
  %v410 = vadd.f32 %v409, %v390
  %v411 = vadd.f32 %v410, %v392
  %v412 = vadd.f32 %v411, %v394
  %v413 = vadd.f32 %v412, %v396
  %v414 = vadd.f32 %v413, %v398
  %v415 = vadd.f32 %v414, %v400
  %v416 = vrot.slane %v415, 4
  %v417 = vadd.f32 %v415, %v416
  %v418 = vrot.slane %v417, 2
  %v419 = vadd.f32 %v417, %v418
  %v420 = vrot.slane %v419, 1
  %v421 = vadd.f32 %v419, %v420
  %v422 = vrcp.pop %v421
  %v423 = vmul.f32 1.0, %v422
  %v424 = vpack.c.bf16 %v164, %v161
  %v425 = vpack.c.bf16 %v172, %v169
  %v426 = vpack.c.bf16 %v372, %v370
  %v427 = vpack.c.bf16 %v376, %v374
  %v428 = vpack.c.bf16 %v380, %v378
  %v429 = vpack.c.bf16 %v384, %v382
  %v430 = vpack.c.bf16 %v388, %v386
  %v431 = vpack.c.bf16 %v392, %v390
  %v432 = vpack.c.bf16 %v396, %v394
  %v433 = vpack.c.bf16 %v400, %v398
  %434 = vmatprep.subr.bf16.mxu0 0
  %435 = vmatpush1.bf16.msra.mxu0 %v426
  %436 = vmatprep.subr.bf16.mxu0 0
  %437 = vmatpush1.bf16.msra.mxu0 %v427
  %438 = vmatprep.subr.bf16.mxu0 0
  %439 = vmatpush1.bf16.msra.mxu0 %v428
  %440 = vmatprep.subr.bf16.mxu0 0
  %441 = vmatpush1.bf16.msra.mxu0 %v429
  %442 = vmatprep.subr.bf16.mxu0 0
  %443 = vmatpush1.bf16.msra.mxu0 %v430
  %444 = vmatprep.subr.bf16.mxu0 0
  %445 = vmatpush1.bf16.msra.mxu0 %v431
  %446 = vmatprep.subr.bf16.mxu0 0
  %447 = vmatpush1.bf16.msra.mxu0 %v432
  %448 = vmatprep.subr.bf16.mxu0 0
  %449 = vmatpush1.bf16.msra.mxu0 %v433
  %450 = vmatprep.subr.bf16.mxu0 0
  %451 = vmatpush1.bf16.msra.mxu0 0
  %452 = vmatprep.subr.bf16.mxu0 0
  %453 = vmatpush1.bf16.msra.mxu0 0
  %454 = vmatprep.subr.bf16.mxu0 0
  %455 = vmatpush1.bf16.msra.mxu0 0
  %456 = vmatprep.subr.bf16.mxu0 0
  %457 = vmatpush1.bf16.msra.mxu0 0
  %458 = vmatprep.subr.bf16.mxu0 0
  %459 = vmatpush1.bf16.msra.mxu0 0
  %460 = vmatprep.subr.bf16.mxu0 0
  %461 = vmatpush1.bf16.msra.mxu0 0
  %462 = vmatprep.subr.bf16.mxu0 0
  %463 = vmatpush1.bf16.msra.mxu0 0
  %464 = vmatprep.subr.bf16.mxu0 0
  %465 = vmatpush1.bf16.msra.mxu0 0
  %466 = vmatprep.mubr.bf16.mxu0 0
  %467 = vmatmul.mubr.bf16.gmra.mrb[0].mxu0 %v424
  %v468 = vpop.f32.mrb[0].mxu0
  %v469 = vadd.f32 0.0, %v468
  %v470 = vpop.f32.mrb[0].mxu0
  %v471 = vpop.f32.mrb[0].mxu0
  %v472 = vadd.f32 0.0, %v471
  %v473 = vpop.f32.mrb[0].mxu0
  %474 = vmatprep.mubr.bf16.mxu0 0
  %475 = vmatmul.mubr.bf16.gmra.mrb[0].mxu0 %v425
  %v476 = vpop.f32.mrb[0].mxu0
  %v477 = vadd.f32 0.0, %v476
  %v478 = vpop.f32.mrb[0].mxu0
  %v479 = vpop.f32.mrb[0].mxu0
  %v480 = vadd.f32 0.0, %v479
  %v481 = vpop.f32.mrb[0].mxu0
  %482 = vdwg.mxu0
  %v483 = vmul.f32 %v469, %v423
  %v484 = vmul.f32 %v472, %v423
  %v485 = vmul.f32 %v477, %v423
  %v486 = vmul.f32 %v480, %v423
  %v487 = vld [vmem:[%s1 + $0x30] sm:$0xf]
  %v488 = vld [vmem:[%s1 + $0x34] sm:$0xf]
  %v489 = vld [vmem:[%s1 + $0x38] sm:$0xf]
  %v490 = vld [vmem:[%s1 + $0x3c] sm:$0xf]
  %v491 = vpack.c.bf16 %v484, %v483
  %v492 = vpack.c.bf16 %v486, %v485
  %v493 = vld [vmem:[%s2 + $0xe0] sm:$0xff]
  %v494 = vld [vmem:[%s2 + $0xe8] sm:$0xff]
  %v495 = vld [vmem:[%s2 + $0xf0] sm:$0xff]
  %v496 = vld [vmem:[%s2 + $0xf8] sm:$0xff]
  %v501 = vunpack.c.l.b16 %v487
  %v502 = vunpack.c.l.b16 %v488
  %v503 = vunpack.c.l.b16 %v489
  %v504 = vunpack.c.l.b16 %v490
  %v505 = vpack.c.b16 %v502, %v501
  %v506 = vpack.c.b16 %v504, %v503
  %v508 = vsel %vm75, %v505, 0
  %v511 = vsel %vm75, %v506, 0
  %513 = vmatprep.subr.bf16.mxu0 0
  %514 = vmatpush1.bf16.msra.mxu0 %v491
  %515 = vmatprep.subr.bf16.mxu0 0
  %516 = vmatpush1.bf16.msra.mxu0 %v492
  %517 = vmatprep.subr.bf16.mxu0 0
  %518 = vmatpush1.bf16.msra.mxu0 0
  %519 = vmatprep.subr.bf16.mxu0 0
  %520 = vmatpush1.bf16.msra.mxu0 0
  %521 = vmatprep.subr.bf16.mxu0 0
  %522 = vmatpush1.bf16.msra.mxu0 0
  %523 = vmatprep.subr.bf16.mxu0 0
  %524 = vmatpush1.bf16.msra.mxu0 0
  %525 = vmatprep.subr.bf16.mxu0 0
  %526 = vmatpush1.bf16.msra.mxu0 0
  %527 = vmatprep.subr.bf16.mxu0 0
  %528 = vmatpush1.bf16.msra.mxu0 0
  %529 = vmatprep.subr.bf16.mxu0 0
  %530 = vmatpush1.bf16.msra.mxu0 0
  %531 = vmatprep.subr.bf16.mxu0 0
  %532 = vmatpush1.bf16.msra.mxu0 0
  %533 = vmatprep.subr.bf16.mxu0 0
  %534 = vmatpush1.bf16.msra.mxu0 0
  %535 = vmatprep.subr.bf16.mxu0 0
  %536 = vmatpush1.bf16.msra.mxu0 0
  %537 = vmatprep.subr.bf16.mxu0 0
  %538 = vmatpush1.bf16.msra.mxu0 0
  %539 = vmatprep.subr.bf16.mxu0 0
  %540 = vmatpush1.bf16.msra.mxu0 0
  %541 = vmatprep.subr.bf16.mxu0 0
  %542 = vmatpush1.bf16.msra.mxu0 0
  %543 = vmatprep.subr.bf16.mxu0 0
  %544 = vmatpush1.bf16.msra.mxu0 0
  %545 = vmatprep.mubr.bf16.mxu0 0
  %546 = vmatmul.mubr.bf16.gmra.mrb[0].mxu0 %v508
  %v547 = vpop.f32.mrb[0].mxu0
  %v548 = vadd.f32 %v493, %v547
  %v549 = vpop.f32.mrb[0].mxu0
  %v550 = vpop.f32.mrb[0].mxu0
  %v551 = vadd.f32 %v494, %v550
  %v552 = vpop.f32.mrb[0].mxu0
  %553 = vmatprep.mubr.bf16.mxu0 0
  %554 = vmatmul.mubr.bf16.gmra.mrb[0].mxu0 %v511
  %v555 = vpop.f32.mrb[0].mxu0
  %v556 = vadd.f32 %v495, %v555
  %v557 = vpop.f32.mrb[0].mxu0
  %v558 = vpop.f32.mrb[0].mxu0
  %v559 = vadd.f32 %v496, %v558
  %v560 = vpop.f32.mrb[0].mxu0
  %561 = vdwg.mxu0
  %v562 = vpack.c.bf16 %v551, %v548
  %v563 = vpack.c.bf16 %v559, %v556
  %v564 = vld [vmem:[%s1 + $0x40] sm:$0xf]
  %v565 = vld [vmem:[%s1 + $0x44] sm:$0xf]
  %v566 = vld [vmem:[%s1 + $0x48] sm:$0xf]
  %v567 = vld [vmem:[%s1 + $0x4c] sm:$0xf]
  %v568 = vld [vmem:[%s1 + $0x50] sm:$0xf]
  %v569 = vld [vmem:[%s1 + $0x54] sm:$0xf]
  %v570 = vld [vmem:[%s1 + $0x58] sm:$0xf]
  %v571 = vld [vmem:[%s1 + $0x5c] sm:$0xf]
  %v572 = vld [vmem:[%s1 + $0x60] sm:$0xf]
  %v573 = vld [vmem:[%s1 + $0x64] sm:$0xf]
  %v574 = vld [vmem:[%s1 + $0x68] sm:$0xf]
  %v575 = vld [vmem:[%s1 + $0x6c] sm:$0xf]
  %v576 = vld [vmem:[%s1 + $0x70] sm:$0xf]
  %v577 = vld [vmem:[%s1 + $0x74] sm:$0xf]
  %v578 = vld [vmem:[%s1 + $0x78] sm:$0xf]
  %v579 = vld [vmem:[%s1 + $0x7c] sm:$0xf]
  %v580 = vld [vmem:[%s2 + $0x100] sm:$0x1]
  %v581 = vlaneseq
  %v582 = vshrl.u32 %v581, 7
  %v583 = vsub.s32 0, %v582
  %v584 = vrot.slane %v580, %v583
  %v601 = vunpack.c.l.b16 %v564
  %v602 = vunpack.c.l.b16 %v565
  %v603 = vunpack.c.l.b16 %v566
  %v604 = vunpack.c.l.b16 %v567
  %v605 = vunpack.c.l.b16 %v568
  %v606 = vunpack.c.l.b16 %v569
  %v607 = vunpack.c.l.b16 %v570
  %v608 = vunpack.c.l.b16 %v571
  %v609 = vunpack.c.l.b16 %v572
  %v610 = vunpack.c.l.b16 %v573
  %v611 = vunpack.c.l.b16 %v574
  %v612 = vunpack.c.l.b16 %v575
  %v613 = vunpack.c.l.b16 %v576
  %v614 = vunpack.c.l.b16 %v577
  %v615 = vunpack.c.l.b16 %v578
  %v616 = vunpack.c.l.b16 %v579
  %v617 = vpack.c.b16 %v602, %v601
  %v618 = vpack.c.b16 %v604, %v603
  %v619 = vpack.c.b16 %v606, %v605
  %v620 = vpack.c.b16 %v608, %v607
  %v621 = vpack.c.b16 %v610, %v609
  %v622 = vpack.c.b16 %v612, %v611
  %v623 = vpack.c.b16 %v614, %v613
  %v624 = vpack.c.b16 %v616, %v615
  %633 = vmatprep.subr.bf16.mxu0 0
  %634 = vmatpush1.bf16.msra.mxu0 %v617
  %635 = vmatprep.subr.bf16.mxu0 0
  %636 = vmatpush1.bf16.msra.mxu0 %v618
  %637 = vmatprep.subr.bf16.mxu0 0
  %638 = vmatpush1.bf16.msra.mxu0 %v619
  %639 = vmatprep.subr.bf16.mxu0 0
  %640 = vmatpush1.bf16.msra.mxu0 %v620
  %641 = vmatprep.subr.bf16.mxu0 0
  %642 = vmatpush1.bf16.msra.mxu0 %v621
  %643 = vmatprep.subr.bf16.mxu0 0
  %644 = vmatpush1.bf16.msra.mxu0 %v622
  %645 = vmatprep.subr.bf16.mxu0 0
  %646 = vmatpush1.bf16.msra.mxu0 %v623
  %647 = vmatprep.subr.bf16.mxu0 0
  %648 = vmatpush1.bf16.msra.mxu0 %v624
  %649 = vmatprep.subr.bf16.mxu0 0
  %650 = vmatpush1.bf16.msra.mxu0 0
  %651 = vmatprep.subr.bf16.mxu0 0
  %652 = vmatpush1.bf16.msra.mxu0 0
  %653 = vmatprep.subr.bf16.mxu0 0
  %654 = vmatpush1.bf16.msra.mxu0 0
  %655 = vmatprep.subr.bf16.mxu0 0
  %656 = vmatpush1.bf16.msra.mxu0 0
  %657 = vmatprep.subr.bf16.mxu0 0
  %658 = vmatpush1.bf16.msra.mxu0 0
  %659 = vmatprep.subr.bf16.mxu0 0
  %660 = vmatpush1.bf16.msra.mxu0 0
  %661 = vmatprep.subr.bf16.mxu0 0
  %662 = vmatpush1.bf16.msra.mxu0 0
  %663 = vmatprep.subr.bf16.mxu0 0
  %664 = vmatpush1.bf16.msra.mxu0 0
  %665 = vmatprep.mubr.bf16.mxu0 0
  %666 = vmatmul.mubr.bf16.gmra.mrb[0].mxu0 %v562
  %v667 = vpop.f32.mrb[0].mxu0
  %v668 = vadd.f32 %v584, %v667
  %v669 = vpop.f32.mrb[0].mxu0
  %v670 = vpop.f32.mrb[0].mxu0
  %v671 = vadd.f32 %v584, %v670
  %v672 = vpop.f32.mrb[0].mxu0
  %673 = vmatprep.mubr.bf16.mxu0 0
  %674 = vmatmul.mubr.bf16.gmra.mrb[0].mxu0 %v563
  %v675 = vpop.f32.mrb[0].mxu0
  %v676 = vadd.f32 %v584, %v675
  %v677 = vpop.f32.mrb[0].mxu0
  %v678 = vpop.f32.mrb[0].mxu0
  %v679 = vadd.f32 %v584, %v678
  %v680 = vpop.f32.mrb[0].mxu0
  %681 = vdwg.mxu0
  %v682 = vsub.f32 0.0, %v668
  %v683 = vsub.f32 0.0, %v671
  %v684 = vsub.f32 0.0, %v676
  %v685 = vsub.f32 0.0, %v679
  %v686 = vmul.f32 %v682, 1.442695
  %v687 = vpow.pop %v686
  %v688 = vmul.f32 %v683, 1.442695
  %v689 = vpow.pop %v688
  %v690 = vmul.f32 %v684, 1.442695
  %v691 = vpow.pop %v690
  %v692 = vmul.f32 %v685, 1.442695
  %v693 = vpow.pop %v692
  %v694 = vadd.f32 %v687, 1.0
  %v695 = vadd.f32 %v689, 1.0
  %v696 = vadd.f32 %v691, 1.0
  %v697 = vadd.f32 %v693, 1.0
  %v698 = vrcp.pop %v694
  %v699 = vrcp.pop %v695
  %v700 = vrcp.pop %v696
  %v701 = vrcp.pop %v697
  %v702 = vmul.f32 %v668, %v698
  %v703 = vmul.f32 %v671, %v699
  %v704 = vmul.f32 %v676, %v700
  %v705 = vmul.f32 %v679, %v701
  %v706 = vadd.f32 %v702, %v15
  %v707 = vadd.f32 %v703, %v16
  %v708 = vadd.f32 %v704, %v17
  %v709 = vadd.f32 %v705, %v18
  %v710 = vld [vmem:[%s2 + $0x108] sm:$0x7f]
  %711 = vrot.lane.b32.xlu0 %v706, 3
  %v712 = vpop.permute.xlu0 %711
  %713 = vrot.lane.b32.xlu0 %v707, 3
  %v714 = vpop.permute.xlu0 %713
  %715 = vrot.lane.b32.xlu0 %v708, 3
  %v716 = vpop.permute.xlu0 %715
  %717 = vrot.lane.b32.xlu0 %v709, 3
  %v718 = vpop.permute.xlu0 %717
  %v719 = vlaneseq
  %v720 = vshrl.u32 %v719, 7
  %v721 = vsub.s32 0, %v720
  %v722 = vrot.slane %v710, %v721
  %v723 = vmul.f32 %v712, %v722
  %v724 = vmul.f32 %v714, %v722
  %v725 = vmul.f32 %v716, %v722
  %v726 = vmul.f32 %v718, %v722
  %v727 = vpack.c.bf16 %v724, %v723
  %v728 = vpack.c.bf16 %v726, %v725
  %729 = vrot.lane.b32.xlu0 %v706, 2
  %v730 = vpop.permute.xlu0 %729
  %731 = vrot.lane.b32.xlu0 %v707, 2
  %v732 = vpop.permute.xlu0 %731
  %733 = vrot.lane.b32.xlu0 %v708, 2
  %v734 = vpop.permute.xlu0 %733
  %735 = vrot.lane.b32.xlu0 %v709, 2
  %v736 = vpop.permute.xlu0 %735
  %v737 = vlaneseq
  %v738 = vshrl.u32 %v737, 7
  %v739 = vsub.s32 1, %v738
  %v740 = vrot.slane %v710, %v739
  %v741 = vmul.f32 %v730, %v740
  %v742 = vmul.f32 %v732, %v740
  %v743 = vmul.f32 %v734, %v740
  %v744 = vmul.f32 %v736, %v740
  %v745 = vpack.c.bf16 %v742, %v741
  %v746 = vpack.c.bf16 %v744, %v743
  %747 = vrot.lane.b32.xlu0 %v706, 1
  %v748 = vpop.permute.xlu0 %747
  %749 = vrot.lane.b32.xlu0 %v707, 1
  %v750 = vpop.permute.xlu0 %749
  %751 = vrot.lane.b32.xlu0 %v708, 1
  %v752 = vpop.permute.xlu0 %751
  %753 = vrot.lane.b32.xlu0 %v709, 1
  %v754 = vpop.permute.xlu0 %753
  %v755 = vlaneseq
  %v756 = vshrl.u32 %v755, 7
  %v757 = vsub.s32 2, %v756
  %v758 = vrot.slane %v710, %v757
  %v759 = vmul.f32 %v748, %v758
  %v760 = vmul.f32 %v750, %v758
  %v761 = vmul.f32 %v752, %v758
  %v762 = vmul.f32 %v754, %v758
  %v763 = vpack.c.bf16 %v760, %v759
  %v764 = vpack.c.bf16 %v762, %v761
  %v765 = vpack.c.bf16 %v707, %v706
  %v766 = vpack.c.bf16 %v709, %v708
  %767 = vrot.lane.b32.xlu0 %v706, 127
  %v768 = vpop.permute.xlu0 %767
  %769 = vrot.lane.b32.xlu0 %v707, 127
  %v770 = vpop.permute.xlu0 %769
  %771 = vrot.lane.b32.xlu0 %v708, 127
  %v772 = vpop.permute.xlu0 %771
  %773 = vrot.lane.b32.xlu0 %v709, 127
  %v774 = vpop.permute.xlu0 %773
  %v775 = vlaneseq
  %v776 = vshrl.u32 %v775, 7
  %v777 = vsub.s32 4, %v776
  %v778 = vrot.slane %v710, %v777
  %v779 = vmul.f32 %v768, %v778
  %v780 = vmul.f32 %v770, %v778
  %v781 = vmul.f32 %v772, %v778
  %v782 = vmul.f32 %v774, %v778
  %v783 = vpack.c.bf16 %v780, %v779
  %v784 = vpack.c.bf16 %v782, %v781
  %785 = vrot.lane.b32.xlu0 %v706, 126
  %v786 = vpop.permute.xlu0 %785
  %787 = vrot.lane.b32.xlu0 %v707, 126
  %v788 = vpop.permute.xlu0 %787
  %789 = vrot.lane.b32.xlu0 %v708, 126
  %v790 = vpop.permute.xlu0 %789
  %791 = vrot.lane.b32.xlu0 %v709, 126
  %v792 = vpop.permute.xlu0 %791
  %v793 = vlaneseq
  %v794 = vshrl.u32 %v793, 7
  %v795 = vsub.s32 5, %v794
  %v796 = vrot.slane %v710, %v795
  %v797 = vmul.f32 %v786, %v796
  %v798 = vmul.f32 %v788, %v796
  %v799 = vmul.f32 %v790, %v796
  %v800 = vmul.f32 %v792, %v796
  %v801 = vpack.c.bf16 %v798, %v797
  %v802 = vpack.c.bf16 %v800, %v799
  %803 = vrot.lane.b32.xlu0 %v706, 125
  %v804 = vpop.permute.xlu0 %803
  %805 = vrot.lane.b32.xlu0 %v707, 125
  %v806 = vpop.permute.xlu0 %805
  %807 = vrot.lane.b32.xlu0 %v708, 125
  %v808 = vpop.permute.xlu0 %807
  %809 = vrot.lane.b32.xlu0 %v709, 125
  %v810 = vpop.permute.xlu0 %809
  %v811 = vlaneseq
  %v812 = vshrl.u32 %v811, 7
  %v813 = vsub.s32 6, %v812
  %v814 = vrot.slane %v710, %v813
  %v815 = vmul.f32 %v804, %v814
  %v816 = vmul.f32 %v806, %v814
  %v817 = vmul.f32 %v808, %v814
  %v818 = vmul.f32 %v810, %v814
  %v819 = vpack.c.bf16 %v816, %v815
  %v820 = vpack.c.bf16 %v818, %v817
  %v821 = vld [vmem:[%s1 + $0x80] sm:$0xf]
  %v822 = vld [vmem:[%s1 + $0x84] sm:$0xf]
  %v823 = vld [vmem:[%s1 + $0x88] sm:$0xf]
  %v824 = vld [vmem:[%s1 + $0x8c] sm:$0xf]
  %v825 = vld [vmem:[%s1 + $0x90] sm:$0xf]
  %v826 = vld [vmem:[%s1 + $0x94] sm:$0xf]
  %v827 = vld [vmem:[%s1 + $0x98] sm:$0xf]
  %v828 = vld [vmem:[%s1 + $0x9c] sm:$0xf]
  %v829 = vld [vmem:[%s1 + $0xa0] sm:$0xf]
  %v830 = vld [vmem:[%s1 + $0xa4] sm:$0xf]
  %v831 = vld [vmem:[%s1 + $0xa8] sm:$0xf]
  %v832 = vld [vmem:[%s1 + $0xac] sm:$0xf]
  %v833 = vld [vmem:[%s1 + $0xb0] sm:$0xf]
  %v834 = vld [vmem:[%s1 + $0xb4] sm:$0xf]
  %v835 = vld [vmem:[%s1 + $0xb8] sm:$0xf]
  %v836 = vld [vmem:[%s1 + $0xbc] sm:$0xf]
  %v837 = vld [vmem:[%s1 + $0xc0] sm:$0xf]
  %v838 = vld [vmem:[%s1 + $0xc4] sm:$0xf]
  %v839 = vld [vmem:[%s1 + $0xc8] sm:$0xf]
  %v840 = vld [vmem:[%s1 + $0xcc] sm:$0xf]
  %v841 = vld [vmem:[%s1 + $0xd0] sm:$0xf]
  %v842 = vld [vmem:[%s1 + $0xd4] sm:$0xf]
  %v843 = vld [vmem:[%s1 + $0xd8] sm:$0xf]
  %v844 = vld [vmem:[%s1 + $0xdc] sm:$0xf]
  %v845 = vld [vmem:[%s1 + $0xe0] sm:$0xf]
  %v846 = vld [vmem:[%s1 + $0xe4] sm:$0xf]
  %v847 = vld [vmem:[%s1 + $0xe8] sm:$0xf]
  %v848 = vld [vmem:[%s1 + $0xec] sm:$0xf]
  %v849 = vld [vmem:[%s2 + $0x110] sm:$0xff]
  %v850 = vld [vmem:[%s2 + $0x118] sm:$0xff]
  %v879 = vunpack.c.l.b16 %v821
  %v880 = vunpack.c.l.b16 %v822
  %v881 = vunpack.c.l.b16 %v823
  %v882 = vunpack.c.l.b16 %v824
  %v883 = vunpack.c.l.b16 %v825
  %v884 = vunpack.c.l.b16 %v826
  %v885 = vunpack.c.l.b16 %v827
  %v886 = vunpack.c.l.b16 %v828
  %v887 = vunpack.c.l.b16 %v829
  %v888 = vunpack.c.l.b16 %v830
  %v889 = vunpack.c.l.b16 %v831
  %v890 = vunpack.c.l.b16 %v832
  %v891 = vunpack.c.l.b16 %v833
  %v892 = vunpack.c.l.b16 %v834
  %v893 = vunpack.c.l.b16 %v835
  %v894 = vunpack.c.l.b16 %v836
  %v895 = vunpack.c.l.b16 %v837
  %v896 = vunpack.c.l.b16 %v838
  %v897 = vunpack.c.l.b16 %v839
  %v898 = vunpack.c.l.b16 %v840
  %v899 = vunpack.c.l.b16 %v841
  %v900 = vunpack.c.l.b16 %v842
  %v901 = vunpack.c.l.b16 %v843
  %v902 = vunpack.c.l.b16 %v844
  %v903 = vunpack.c.l.b16 %v845
  %v904 = vunpack.c.l.b16 %v846
  %v905 = vunpack.c.l.b16 %v847
  %v906 = vunpack.c.l.b16 %v848
  %v907 = vpack.c.b16 %v880, %v879
  %v908 = vpack.c.b16 %v882, %v881
  %v909 = vpack.c.b16 %v884, %v883
  %v910 = vpack.c.b16 %v886, %v885
  %v911 = vpack.c.b16 %v888, %v887
  %v912 = vpack.c.b16 %v890, %v889
  %v913 = vpack.c.b16 %v892, %v891
  %v914 = vpack.c.b16 %v894, %v893
  %v915 = vpack.c.b16 %v896, %v895
  %v916 = vpack.c.b16 %v898, %v897
  %v917 = vpack.c.b16 %v900, %v899
  %v918 = vpack.c.b16 %v902, %v901
  %v919 = vpack.c.b16 %v904, %v903
  %v920 = vpack.c.b16 %v906, %v905
  %935 = vxpose.xlu0.c.b16.start [1/8] %v907, 128
  %936 = vxpose.xlu0.c.b16.cont [2/8] %v908, 128
  %937 = vxpose.xlu0.c.b16.cont [3/8] %v909, 128
  %938 = vxpose.xlu0.c.b16.cont [4/8] %v910, 128
  %939 = vxpose.xlu0.c.b16.cont [5/8] %v911, 128
  %940 = vxpose.xlu0.c.b16.cont [6/8] %v912, 128
  %941 = vxpose.xlu0.c.b16.cont [7/8] %v913, 128
  %942 = vxpose.xlu0.c.b16.end [8/8] %v914, 128
  %v943 = vpop.trf.xlu0
  %v944 = vpop.trf.xlu0
  %v945 = vpop.trf.xlu0
  %v946 = vpop.trf.xlu0
  %v947 = vpop.trf.xlu0
  %v948 = vpop.trf.xlu0
  %v949 = vpop.trf.xlu0
  %v950 = vpop.trf.xlu0
  %951 = vxpose.xlu0.c.b16.start [1/8] %v915, 128
  %952 = vxpose.xlu0.c.b16.cont [2/8] %v916, 128
  %953 = vxpose.xlu0.c.b16.cont [3/8] %v917, 128
  %954 = vxpose.xlu0.c.b16.cont [4/8] %v918, 128
  %955 = vxpose.xlu0.c.b16.cont [5/8] %v919, 128
  %956 = vxpose.xlu0.c.b16.cont [6/8] %v920, 128
  %957 = vxpose.xlu0.c.b16.cont [7/8] 0, 128
  %958 = vxpose.xlu0.c.b16.end [8/8] 0, 128
  %v959 = vpop.trf.xlu0
  %v960 = vpop.trf.xlu0
  %v961 = vpop.trf.xlu0
  %v962 = vpop.trf.xlu0
  %v963 = vpop.trf.xlu0
  %v964 = vpop.trf.xlu0
  %v965 = vpop.trf.xlu0
  %v966 = vpop.trf.xlu0
  %vm967 = vcmask 785408
  %v969 = vsel %vm967, %v959, 0
  %971 = vmatprep.subr.bf16.mxu0 0
  %972 = vmatpush1.bf16.msra.mxu0 %v727
  %973 = vmatprep.subr.bf16.mxu0 0
  %974 = vmatpush1.bf16.msra.mxu0 %v728
  %975 = vmatprep.subr.bf16.mxu0 0
  %976 = vmatpush1.bf16.msra.mxu0 %v745
  %977 = vmatprep.subr.bf16.mxu0 0
  %978 = vmatpush1.bf16.msra.mxu0 %v746
  %979 = vmatprep.subr.bf16.mxu0 0
  %980 = vmatpush1.bf16.msra.mxu0 %v763
  %981 = vmatprep.subr.bf16.mxu0 0
  %982 = vmatpush1.bf16.msra.mxu0 %v764
  %983 = vmatprep.subr.bf16.mxu0 0
  %984 = vmatpush1.bf16.msra.mxu0 %v765
  %985 = vmatprep.subr.bf16.mxu0 0
  %986 = vmatpush1.bf16.msra.mxu0 %v766
  %987 = vmatprep.subr.bf16.mxu0 0
  %988 = vmatpush1.bf16.msra.mxu0 %v783
  %989 = vmatprep.subr.bf16.mxu0 0
  %990 = vmatpush1.bf16.msra.mxu0 %v784
  %991 = vmatprep.subr.bf16.mxu0 0
  %992 = vmatpush1.bf16.msra.mxu0 %v801
  %993 = vmatprep.subr.bf16.mxu0 0
  %994 = vmatpush1.bf16.msra.mxu0 %v802
  %995 = vmatprep.subr.bf16.mxu0 0
  %996 = vmatpush1.bf16.msra.mxu0 %v819
  %997 = vmatprep.subr.bf16.mxu0 0
  %998 = vmatpush1.bf16.msra.mxu0 %v820
  %999 = vmatprep.subr.bf16.mxu0 0
  %1000 = vmatpush1.bf16.msra.mxu0 0
  %1001 = vmatprep.subr.bf16.mxu0 0
  %1002 = vmatpush1.bf16.msra.mxu0 0
  %1003 = vmatprep.mubr.bf16.mxu0 %v969
  %1004 = vmatmul.mubr.bf16.gmra.mrb[0].mxu0 %v943
  %v1005 = vpop.f32.mrb[0].mxu0
  %v1006 = vadd.f32 %v849, %v1005
  %v1007 = vpop.f32.mrb[0].mxu0
  %v1008 = vpop.f32.mrb[0].mxu0
  %v1009 = vadd.f32 %v850, %v1008
  %v1010 = vpop.f32.mrb[0].mxu0
  %1011 = vdwg.mxu0
  %v1012 = vsub.f32 0.0, %v1006
  %v1013 = vsub.f32 0.0, %v1009
  %v1014 = vmul.f32 %v1012, 1.442695
  %v1015 = vpow.pop %v1014
  %v1016 = vmul.f32 %v1013, 1.442695
  %v1017 = vpow.pop %v1016
  %v1018 = vadd.f32 %v1015, 1.0
  %v1019 = vadd.f32 %v1017, 1.0
  %v1020 = vrcp.pop %v1018
  %v1021 = vrcp.pop %v1019
  %v1022 = vmul.f32 %v1006, %v1020
  %v1023 = vmul.f32 %v1009, %v1021
  %1024 = vrot.lane.b32.xlu0 %v1022, 3
  %v1025 = vpop.permute.xlu0 %1024
  %1026 = vrot.lane.b32.xlu0 %v1023, 3
  %v1027 = vpop.permute.xlu0 %1026
  %v1028 = vmul.f32 %v1025, %v722
  %v1029 = vmul.f32 %v1027, %v722
  %v1030 = vpack.c.bf16 %v1029, %v1028
  %1031 = vrot.lane.b32.xlu0 %v1022, 2
  %v1032 = vpop.permute.xlu0 %1031
  %1033 = vrot.lane.b32.xlu0 %v1023, 2
  %v1034 = vpop.permute.xlu0 %1033
  %v1035 = vmul.f32 %v1032, %v740
  %v1036 = vmul.f32 %v1034, %v740
  %v1037 = vpack.c.bf16 %v1036, %v1035
  %1038 = vrot.lane.b32.xlu0 %v1022, 1
  %v1039 = vpop.permute.xlu0 %1038
  %1040 = vrot.lane.b32.xlu0 %v1023, 1
  %v1041 = vpop.permute.xlu0 %1040
  %v1042 = vmul.f32 %v1039, %v758
  %v1043 = vmul.f32 %v1041, %v758
  %v1044 = vpack.c.bf16 %v1043, %v1042
  %v1045 = vpack.c.bf16 %v1023, %v1022
  %1046 = vrot.lane.b32.xlu0 %v1022, 127
  %v1047 = vpop.permute.xlu0 %1046
  %1048 = vrot.lane.b32.xlu0 %v1023, 127
  %v1049 = vpop.permute.xlu0 %1048
  %v1050 = vmul.f32 %v1047, %v778
  %v1051 = vmul.f32 %v1049, %v778
  %v1052 = vpack.c.bf16 %v1051, %v1050
  %1053 = vrot.lane.b32.xlu0 %v1022, 126
  %v1054 = vpop.permute.xlu0 %1053
  %1055 = vrot.lane.b32.xlu0 %v1023, 126
  %v1056 = vpop.permute.xlu0 %1055
  %v1057 = vmul.f32 %v1054, %v796
  %v1058 = vmul.f32 %v1056, %v796
  %v1059 = vpack.c.bf16 %v1058, %v1057
  %1060 = vrot.lane.b32.xlu0 %v1022, 125
  %v1061 = vpop.permute.xlu0 %1060
  %1062 = vrot.lane.b32.xlu0 %v1023, 125
  %v1063 = vpop.permute.xlu0 %1062
  %v1064 = vmul.f32 %v1061, %v814
  %v1065 = vmul.f32 %v1063, %v814
  %v1066 = vpack.c.bf16 %v1065, %v1064
  %v1067 = vld [vmem:[%s1 + $0xf0] sm:$0xf]
  %v1068 = vld [vmem:[%s1 + $0xf4] sm:$0xf]
  %v1069 = vld [vmem:[%s1 + $0xf8] sm:$0xf]
  %v1070 = vld [vmem:[%s1 + $0xfc] sm:$0xf]
  %v1071 = vld [vmem:[%s1 + $0x100] sm:$0xf]
  %v1072 = vld [vmem:[%s1 + $0x104] sm:$0xf]
  %v1073 = vld [vmem:[%s1 + $0x108] sm:$0xf]
  %v1074 = vld [vmem:[%s1 + $0x10c] sm:$0xf]
  %v1075 = vld [vmem:[%s1 + $0x110] sm:$0xf]
  %v1076 = vld [vmem:[%s1 + $0x114] sm:$0xf]
  %v1077 = vld [vmem:[%s1 + $0x118] sm:$0xf]
  %v1078 = vld [vmem:[%s1 + $0x11c] sm:$0xf]
  %v1079 = vld [vmem:[%s1 + $0x120] sm:$0xf]
  %v1080 = vld [vmem:[%s1 + $0x124] sm:$0xf]
  %v1081 = vld [vmem:[%s2 + $0x120] sm:$0x1]
  %v1096 = vunpack.c.l.b16 %v1067
  %v1097 = vunpack.c.l.b16 %v1068
  %v1098 = vunpack.c.l.b16 %v1069
  %v1099 = vunpack.c.l.b16 %v1070
  %v1100 = vunpack.c.l.b16 %v1071
  %v1101 = vunpack.c.l.b16 %v1072
  %v1102 = vunpack.c.l.b16 %v1073
  %v1103 = vunpack.c.l.b16 %v1074
  %v1104 = vunpack.c.l.b16 %v1075
  %v1105 = vunpack.c.l.b16 %v1076
  %v1106 = vunpack.c.l.b16 %v1077
  %v1107 = vunpack.c.l.b16 %v1078
  %v1108 = vunpack.c.l.b16 %v1079
  %v1109 = vunpack.c.l.b16 %v1080
  %v1110 = vpack.c.b16 %v1097, %v1096
  %v1111 = vpack.c.b16 %v1099, %v1098
  %v1112 = vpack.c.b16 %v1101, %v1100
  %v1113 = vpack.c.b16 %v1103, %v1102
  %v1114 = vpack.c.b16 %v1105, %v1104
  %v1115 = vpack.c.b16 %v1107, %v1106
  %v1116 = vpack.c.b16 %v1109, %v1108
  %1124 = vxpose.xlu0.c.b16.start [1/8] %v1110, 128
  %1125 = vxpose.xlu0.c.b16.cont [2/8] %v1111, 128
  %1126 = vxpose.xlu0.c.b16.cont [3/8] %v1112, 128
  %1127 = vxpose.xlu0.c.b16.cont [4/8] %v1113, 128
  %1128 = vxpose.xlu0.c.b16.cont [5/8] %v1114, 128
  %1129 = vxpose.xlu0.c.b16.cont [6/8] %v1115, 128
  %1130 = vxpose.xlu0.c.b16.cont [7/8] %v1116, 128
  %1131 = vxpose.xlu0.c.b16.end [8/8] 0, 128
  %v1132 = vpop.trf.xlu0
  %v1133 = vpop.trf.xlu0
  %v1134 = vpop.trf.xlu0
  %v1135 = vpop.trf.xlu0
  %v1136 = vpop.trf.xlu0
  %v1137 = vpop.trf.xlu0
  %v1138 = vpop.trf.xlu0
  %v1139 = vpop.trf.xlu0
  %vm1140 = vcmask 916480
  %v1142 = vsel %vm1140, %v1132, 0
  %1144 = vmatprep.subr.bf16.mxu0 0
  %1145 = vmatpush1.bf16.msra.mxu0 %v1030
  %1146 = vmatprep.subr.bf16.mxu0 0
  %1147 = vmatpush1.bf16.msra.mxu0 %v1037
  %1148 = vmatprep.subr.bf16.mxu0 0
  %1149 = vmatpush1.bf16.msra.mxu0 %v1044
  %1150 = vmatprep.subr.bf16.mxu0 0
  %1151 = vmatpush1.bf16.msra.mxu0 %v1045
  %1152 = vmatprep.subr.bf16.mxu0 0
  %1153 = vmatpush1.bf16.msra.mxu0 %v1052
  %1154 = vmatprep.subr.bf16.mxu0 0
  %1155 = vmatpush1.bf16.msra.mxu0 %v1059
  %1156 = vmatprep.subr.bf16.mxu0 0
  %1157 = vmatpush1.bf16.msra.mxu0 %v1066
  %1158 = vmatprep.subr.bf16.mxu0 0
  %1159 = vmatpush1.bf16.msra.mxu0 0
  %1160 = vmatprep.subr.bf16.mxu0 0
  %1161 = vmatpush1.bf16.msra.mxu0 0
  %1162 = vmatprep.subr.bf16.mxu0 0
  %1163 = vmatpush1.bf16.msra.mxu0 0
  %1164 = vmatprep.subr.bf16.mxu0 0
  %1165 = vmatpush1.bf16.msra.mxu0 0
  %1166 = vmatprep.subr.bf16.mxu0 0
  %1167 = vmatpush1.bf16.msra.mxu0 0
  %1168 = vmatprep.subr.bf16.mxu0 0
  %1169 = vmatpush1.bf16.msra.mxu0 0
  %1170 = vmatprep.subr.bf16.mxu0 0
  %1171 = vmatpush1.bf16.msra.mxu0 0
  %1172 = vmatprep.subr.bf16.mxu0 0
  %1173 = vmatpush1.bf16.msra.mxu0 0
  %1174 = vmatprep.subr.bf16.mxu0 0
  %1175 = vmatpush1.bf16.msra.mxu0 0
  %1176 = vmatprep.mubr.bf16.mxu0 0
  %1177 = vmatmul.mubr.bf16.gmra.mrb[0].mxu0 %v1142
  %v1178 = vpop.f32.mrb[0].mxu0
  %v1179 = vadd.f32 %v1081, %v1178
  %v1180 = vpop.f32.mrb[0].mxu0
  %v1181 = vpop.f32.mrb[0].mxu0
  %v1182 = vpop.f32.mrb[0].mxu0
  %1183 = vdwg.mxu0
  %v1184 = vsub.f32 0.0, %v1179
  %v1185 = vmul.f32 %v1184, 1.442695
  %v1186 = vpow.pop %v1185
  %v1187 = vadd.f32 %v1186, 1.0
  %v1188 = vrcp.pop %v1187
  %v1189 = vmul.f32 %v1179, %v1188
  %v1190 = vpack.c.bf16 %v1189, %v1189
  %v1191 = vld [vmem:[%s1 + $0x128] sm:$0xf]
  %v1192 = vld [vmem:[%s1 + $0x12c] sm:$0xf]
  %v1193 = vld [vmem:[%s1 + $0x130] sm:$0xf]
  %v1194 = vld [vmem:[%s1 + $0x134] sm:$0xf]
  %v1195 = vld [vmem:[%s1 + $0x138] sm:$0xf]
  %v1196 = vld [vmem:[%s1 + $0x13c] sm:$0xf]
  %v1197 = vld [vmem:[%s1 + $0x140] sm:$0xf]
  %v1198 = vld [vmem:[%s1 + $0x144] sm:$0xf]
  %v1199 = vld [vmem:[%s1 + $0x148] sm:$0xf]
  %v1200 = vld [vmem:[%s1 + $0x14c] sm:$0xf]
  %v1201 = vld [vmem:[%s1 + $0x150] sm:$0xf]
  %v1202 = vld [vmem:[%s1 + $0x154] sm:$0xf]
  %v1203 = vld [vmem:[%s1 + $0x158] sm:$0xf]
  %v1204 = vld [vmem:[%s1 + $0x15c] sm:$0xf]
  %v1205 = vld [vmem:[%s1 + $0x160] sm:$0xf]
  %v1206 = vld [vmem:[%s1 + $0x164] sm:$0xf]
  %v1207 = vld [vmem:[%s2 + $0x128] sm:$0x1]
  %v1224 = vunpack.c.l.b16 %v1191
  %v1225 = vunpack.c.l.b16 %v1192
  %v1226 = vunpack.c.l.b16 %v1193
  %v1227 = vunpack.c.l.b16 %v1194
  %v1228 = vunpack.c.l.b16 %v1195
  %v1229 = vunpack.c.l.b16 %v1196
  %v1230 = vunpack.c.l.b16 %v1197
  %v1231 = vunpack.c.l.b16 %v1198
  %v1232 = vunpack.c.l.b16 %v1199
  %v1233 = vunpack.c.l.b16 %v1200
  %v1234 = vunpack.c.l.b16 %v1201
  %v1235 = vunpack.c.l.b16 %v1202
  %v1236 = vunpack.c.l.b16 %v1203
  %v1237 = vunpack.c.l.b16 %v1204
  %v1238 = vunpack.c.l.b16 %v1205
  %v1239 = vunpack.c.l.b16 %v1206
  %v1240 = vpack.c.b16 %v1225, %v1224
  %v1241 = vpack.c.b16 %v1227, %v1226
  %v1242 = vpack.c.b16 %v1229, %v1228
  %v1243 = vpack.c.b16 %v1231, %v1230
  %v1244 = vpack.c.b16 %v1233, %v1232
  %v1245 = vpack.c.b16 %v1235, %v1234
  %v1246 = vpack.c.b16 %v1237, %v1236
  %v1247 = vpack.c.b16 %v1239, %v1238
  %1256 = vmatprep.subr.bf16.mxu0 0
  %1257 = vmatpush1.bf16.msra.mxu0 %v1240
  %1258 = vmatprep.subr.bf16.mxu0 0
  %1259 = vmatpush1.bf16.msra.mxu0 %v1241
  %1260 = vmatprep.subr.bf16.mxu0 0
  %1261 = vmatpush1.bf16.msra.mxu0 %v1242
  %1262 = vmatprep.subr.bf16.mxu0 0
  %1263 = vmatpush1.bf16.msra.mxu0 %v1243
  %1264 = vmatprep.subr.bf16.mxu0 0
  %1265 = vmatpush1.bf16.msra.mxu0 %v1244
  %1266 = vmatprep.subr.bf16.mxu0 0
  %1267 = vmatpush1.bf16.msra.mxu0 %v1245
  %1268 = vmatprep.subr.bf16.mxu0 0
  %1269 = vmatpush1.bf16.msra.mxu0 %v1246
  %1270 = vmatprep.subr.bf16.mxu0 0
  %1271 = vmatpush1.bf16.msra.mxu0 %v1247
  %1272 = vmatprep.subr.bf16.mxu0 0
  %1273 = vmatpush1.bf16.msra.mxu0 0
  %1274 = vmatprep.subr.bf16.mxu0 0
  %1275 = vmatpush1.bf16.msra.mxu0 0
  %1276 = vmatprep.subr.bf16.mxu0 0
  %1277 = vmatpush1.bf16.msra.mxu0 0
  %1278 = vmatprep.subr.bf16.mxu0 0
  %1279 = vmatpush1.bf16.msra.mxu0 0
  %1280 = vmatprep.subr.bf16.mxu0 0
  %1281 = vmatpush1.bf16.msra.mxu0 0
  %1282 = vmatprep.subr.bf16.mxu0 0
  %1283 = vmatpush1.bf16.msra.mxu0 0
  %1284 = vmatprep.subr.bf16.mxu0 0
  %1285 = vmatpush1.bf16.msra.mxu0 0
  %1286 = vmatprep.subr.bf16.mxu0 0
  %1287 = vmatpush1.bf16.msra.mxu0 0
  %1288 = vmatprep.mubr.bf16.mxu0 0
  %1289 = vmatmul.mubr.bf16.gmra.mrb[0].mxu0 %v1190
  %v1290 = vpop.f32.mrb[0].mxu0
  %v1291 = vadd.f32 %v1207, %v1290
  %v1292 = vpop.f32.mrb[0].mxu0
  %v1293 = vpop.f32.mrb[0].mxu0
  %v1294 = vpop.f32.mrb[0].mxu0
  %1295 = vdwg.mxu0
  %v1296 = vsub.f32 0.0, %v1291
  %v1297 = vmul.f32 %v1296, 1.442695
  %v1298 = vpow.pop %v1297
  %v1299 = vadd.f32 %v1298, 1.0
  %v1300 = vrcp.pop %v1299
  %v1301 = vmul.f32 %v1291, %v1300
  %v1302 = vpack.c.bf16 %v1301, %v1301
  %v1303 = vld [vmem:[%s1 + $0x168] sm:$0xf]
  %v1304 = vld [vmem:[%s1 + $0x16c] sm:$0xf]
  %v1305 = vld [vmem:[%s1 + $0x170] sm:$0xf]
  %v1306 = vld [vmem:[%s1 + $0x174] sm:$0xf]
  %v1307 = vld [vmem:[%s1 + $0x178] sm:$0xf]
  %v1308 = vld [vmem:[%s1 + $0x17c] sm:$0xf]
  %v1309 = vld [vmem:[%s1 + $0x180] sm:$0xf]
  %v1310 = vld [vmem:[%s1 + $0x184] sm:$0xf]
  %v1311 = vld [vmem:[%s2 + $0x130] sm:$0x1]
  %v1320 = vunpack.c.l.b16 %v1303
  %v1321 = vunpack.c.l.b16 %v1304
  %v1322 = vunpack.c.l.b16 %v1305
  %v1323 = vunpack.c.l.b16 %v1306
  %v1324 = vunpack.c.l.b16 %v1307
  %v1325 = vunpack.c.l.b16 %v1308
  %v1326 = vunpack.c.l.b16 %v1309
  %v1327 = vunpack.c.l.b16 %v1310
  %v1328 = vpack.c.b16 %v1321, %v1320
  %v1329 = vpack.c.b16 %v1323, %v1322
  %v1330 = vpack.c.b16 %v1325, %v1324
  %v1331 = vpack.c.b16 %v1327, %v1326
  %vm1336 = vcmask 523264
  %v1338 = vsel %vm1336, %v1302, 0
  %1340 = vmatprep.subr.bf16.mxu0 0
  %1341 = vmatpush1.bf16.msra.mxu0 %v1328
  %1342 = vmatprep.subr.bf16.mxu0 0
  %1343 = vmatpush1.bf16.msra.mxu0 %v1329
  %1344 = vmatprep.subr.bf16.mxu0 0
  %1345 = vmatpush1.bf16.msra.mxu0 %v1330
  %1346 = vmatprep.subr.bf16.mxu0 0
  %1347 = vmatpush1.bf16.msra.mxu0 %v1331
  %1348 = vmatprep.subr.bf16.mxu0 0
  %1349 = vmatpush1.bf16.msra.mxu0 0
  %1350 = vmatprep.subr.bf16.mxu0 0
  %1351 = vmatpush1.bf16.msra.mxu0 0
  %1352 = vmatprep.subr.bf16.mxu0 0
  %1353 = vmatpush1.bf16.msra.mxu0 0
  %1354 = vmatprep.subr.bf16.mxu0 0
  %1355 = vmatpush1.bf16.msra.mxu0 0
  %1356 = vmatprep.subr.bf16.mxu0 0
  %1357 = vmatpush1.bf16.msra.mxu0 0
  %1358 = vmatprep.subr.bf16.mxu0 0
  %1359 = vmatpush1.bf16.msra.mxu0 0
  %1360 = vmatprep.subr.bf16.mxu0 0
  %1361 = vmatpush1.bf16.msra.mxu0 0
  %1362 = vmatprep.subr.bf16.mxu0 0
  %1363 = vmatpush1.bf16.msra.mxu0 0
  %1364 = vmatprep.subr.bf16.mxu0 0
  %1365 = vmatpush1.bf16.msra.mxu0 0
  %1366 = vmatprep.subr.bf16.mxu0 0
  %1367 = vmatpush1.bf16.msra.mxu0 0
  %1368 = vmatprep.subr.bf16.mxu0 0
  %1369 = vmatpush1.bf16.msra.mxu0 0
  %1370 = vmatprep.subr.bf16.mxu0 0
  %1371 = vmatpush1.bf16.msra.mxu0 0
  %1372 = vmatprep.mubr.bf16.mxu0 0
  %1373 = vmatmul.mubr.bf16.gmra.mrb[0].mxu0 %v1338
  %v1374 = vpop.f32.mrb[0].mxu0
  %v1375 = vadd.f32 %v1311, %v1374
  %v1376 = vpop.f32.mrb[0].mxu0
  %v1377 = vpop.f32.mrb[0].mxu0
  %v1378 = vpop.f32.mrb[0].mxu0
  %1379 = vdwg.mxu0
  %v1380 = vsub.f32 0.0, %v1375
  %v1381 = vmul.f32 %v1380, 1.442695
  %v1382 = vpow.pop %v1381
  %v1383 = vadd.f32 %v1382, 1.0
  %v1384 = vrcp.pop %v1383
  %v1385 = vmul.f32 %v1375, %v1384
  %v1386 = vpack.c.bf16 %v1385, %v1385
  %v1387 = vld [vmem:[%s1 + $0x188] sm:$0xf]
  %v1388 = vld [vmem:[%s1 + $0x18c] sm:$0xf]
  %v1389 = vld [vmem:[%s1 + $0x190] sm:$0xf]
  %v1390 = vld [vmem:[%s1 + $0x194] sm:$0xf]
  %v1391 = vld [vmem:[%s2 + $0x138] sm:$0x1]
  %v1396 = vunpack.c.l.b16 %v1387
  %v1397 = vunpack.c.l.b16 %v1388
  %v1398 = vunpack.c.l.b16 %v1389
  %v1399 = vunpack.c.l.b16 %v1390
  %v1400 = vpack.c.b16 %v1397, %v1396
  %v1401 = vpack.c.b16 %v1399, %v1398
  %v1405 = vsel %vm75, %v1386, 0
  %1407 = vmatprep.subr.bf16.mxu0 0
  %1408 = vmatpush1.bf16.msra.mxu0 %v1400
  %1409 = vmatprep.subr.bf16.mxu0 0
  %1410 = vmatpush1.bf16.msra.mxu0 %v1401
  %1411 = vmatprep.subr.bf16.mxu0 0
  %1412 = vmatpush1.bf16.msra.mxu0 0
  %1413 = vmatprep.subr.bf16.mxu0 0
  %1414 = vmatpush1.bf16.msra.mxu0 0
  %1415 = vmatprep.subr.bf16.mxu0 0
  %1416 = vmatpush1.bf16.msra.mxu0 0
  %1417 = vmatprep.subr.bf16.mxu0 0
  %1418 = vmatpush1.bf16.msra.mxu0 0
  %1419 = vmatprep.subr.bf16.mxu0 0
  %1420 = vmatpush1.bf16.msra.mxu0 0
  %1421 = vmatprep.subr.bf16.mxu0 0
  %1422 = vmatpush1.bf16.msra.mxu0 0
  %1423 = vmatprep.subr.bf16.mxu0 0
  %1424 = vmatpush1.bf16.msra.mxu0 0
  %1425 = vmatprep.subr.bf16.mxu0 0
  %1426 = vmatpush1.bf16.msra.mxu0 0
  %1427 = vmatprep.subr.bf16.mxu0 0
  %1428 = vmatpush1.bf16.msra.mxu0 0
  %1429 = vmatprep.subr.bf16.mxu0 0
  %1430 = vmatpush1.bf16.msra.mxu0 0
  %1431 = vmatprep.subr.bf16.mxu0 0
  %1432 = vmatpush1.bf16.msra.mxu0 0
  %1433 = vmatprep.subr.bf16.mxu0 0
  %1434 = vmatpush1.bf16.msra.mxu0 0
  %1435 = vmatprep.subr.bf16.mxu0 0
  %1436 = vmatpush1.bf16.msra.mxu0 0
  %1437 = vmatprep.subr.bf16.mxu0 0
  %1438 = vmatpush1.bf16.msra.mxu0 0
  %1439 = vmatprep.mubr.bf16.mxu0 0
  %1440 = vmatmul.mubr.bf16.gmra.mrb[0].mxu0 %v1405
  %v1441 = vpop.f32.mrb[0].mxu0
  %v1442 = vadd.f32 %v1391, %v1441
  %v1443 = vpop.f32.mrb[0].mxu0
  %v1444 = vpop.f32.mrb[0].mxu0
  %v1445 = vpop.f32.mrb[0].mxu0
  %1446 = vdwg.mxu0
  %v1447 = vmax.f32 %v1442, 0.0
  %v1448 = vand.u32 2147483647, %v1442
  %v1449 = vsub.f32 0.0, %v1448
  %v1450 = vmul.f32 %v1449, 1.442695
  %v1451 = vpow.pop %v1450
  %v1452 = vadd.f32 %v1451, 1.0
  %v1453 = vlog2.pop %v1452
  %v1454 = vmul.f32 %v1453, 0.6931472
  %v1455 = vadd.f32 %v1447, %v1454
  %v1456 = vld [vmem:[%s2 + $0x140] sm:$0x1]
  %v1457 = vmul.f32 %v1455, %v1456
  %v1458 = vld [vmem:[%s2 + $0x148] sm:$0x1]
  %v1459 = vadd.f32 %v1457, %v1458
  %v1460 = vlaneseq
  %v1461 = vshrl.u32 %v1460, 7
  %v1462 = vsub.s32 0, %v1461
  %v1463 = vrot.slane %v1459, %v1462
  %1464 = vst [vmem:[%s3] sm:$0xff] %v1463
  // Predicated region
  $region14: #{nowcast_pnn_forward.1} parent=0 // pred_check
    _
  $region15: #{nowcast_pnn_forward.1} parent=0 // pred_check_branch
    %1466 = sbr.rel (0) target = $region17
  $region16: #{nowcast_pnn_forward.1} parent=0 // pred_region
    _
  $region17: #{nowcast_pnn_forward.1} parent=0 // pred_fallthru
    _
  // Predicated region
  $region18: #{nowcast_pnn_forward.1} parent=0 // pred_check
    _
  $region19: #{nowcast_pnn_forward.1} parent=0 // pred_check_branch
    %1468 = sbr.rel (0) target = $region21
  $region20: #{nowcast_pnn_forward.1} parent=0 // pred_region
    _
  $region21: #{nowcast_pnn_forward.1} parent=0 // pred_fallthru
    _

</llo_original>
